<compile_context>
chip_gen: v6e
topology: v6e:2x2x1
jax: 0.10.0
libtpu: 0.0.40
codegen_flags: <defaults>
</compile_context>

<pallas_src>
import jax
import jax.numpy as jnp
from jax.experimental import pallas as pl
from jax.experimental.pallas import tpu as pltpu

IN_FEATURES = 28 * 28   # 784
HIDDEN = 512
OUT_FEATURES = 10
OUT_PADDED = 128        # lane-dense padded logits width


def _round_up(n, m):
    return ((n + m - 1) // m) * m


def mlp_kernel(x_ref, w1_ref, b1_ref, w2_ref, b2_ref, w3_ref, b3_ref, o_ref):
    # x arrives f32; cast to bf16 in-kernel (cheap VPU work hidden under MXU).
    # All matmuls accumulate in f32; bias-add / ReLU on the f32 accumulator.
    x = x_ref[...].astype(jnp.bfloat16)
    h1 = jnp.dot(x, w1_ref[...], preferred_element_type=jnp.float32) + b1_ref[...]
    h1 = jnp.maximum(h1, 0.0).astype(jnp.bfloat16)
    h2 = jnp.dot(h1, w2_ref[...], preferred_element_type=jnp.float32) + b2_ref[...]
    h2 = jnp.maximum(h2, 0.0).astype(jnp.bfloat16)
    logits = jnp.dot(h2, w3_ref[...], preferred_element_type=jnp.float32) + b3_ref[...]
    o_ref[...] = logits.astype(o_ref.dtype)


def _choose_tiling(B, batch_tile):
    """Pick (tb, B_pad, n_tiles): 8-row aligned, <= batch_tile rows, >= 2 blocks
    when possible (feeds both v7x TensorCores), minimal padded rows."""
    n_tiles = max(pl.cdiv(B, batch_tile), 1)
    if n_tiles == 1 and B >= 16:
        n_tiles = 2  # guarantee >= 2 grid blocks so v7x megacore isn't idle
    tb = _round_up(pl.cdiv(B, n_tiles), 8)
    n_tiles = pl.cdiv(B, tb)
    B_pad = n_tiles * tb
    return tb, B_pad, n_tiles


def neural_net_forward(x_nchw, params, *, batch_tile=1024):
    """x_nchw: (B, 1, 28, 28) float32 -> logits (B, 10) float32.

    params = (w1, b1, w2, b2, w3p, b3p) with w3p/b3p already zero-padded to
    128 output columns (see init_params).
    """
    w1, b1, w2, b2, w3p, b3p = params
    B = x_nchw.shape[0]
    x_flat = x_nchw.reshape(B, -1)  # nn.Flatten; stays f32 (cast happens in-kernel)

    tb, B_pad, n_tiles = _choose_tiling(B, batch_tile)
    if B_pad != B:
        x_flat = jnp.pad(x_flat, ((0, B_pad - B), (0, 0)))

    def const_spec(arr):
        # Whole array as one block, same block index every grid step ->
        # stays VMEM-resident, fetched from HBM only once.
        return pl.BlockSpec(arr.shape, lambda i, _nd=arr.ndim: (0,) * _nd)

    # v5e scoped-VMEM default is 16 MiB; raise it for big tiles. 48 MiB fits
    # comfortably inside v7x's 64 MiB physical VMEM.
    vmem_limit = (48 * 1024 * 1024) if tb >= 512 else None

    out = pl.pallas_call(
        mlp_kernel,
        out_shape=jax.ShapeDtypeStruct((B_pad, OUT_PADDED), jnp.float32),
        grid=(n_tiles,),
        in_specs=[
            pl.BlockSpec((tb, IN_FEATURES), lambda i: (i, 0)),   # x: batch-tiled, f32
            const_spec(w1), const_spec(b1),
            const_spec(w2), const_spec(b2),
            const_spec(w3p), const_spec(b3p),
        ],
        out_specs=pl.BlockSpec((tb, OUT_PADDED), lambda i: (i, 0)),
        compiler_params=pltpu.CompilerParams(
            dimension_semantics=("parallel",),
            vmem_limit_bytes=vmem_limit,
        ),
    )(x_flat, w1, b1, w2, b2, w3p, b3p)

    return out[:B, :OUT_FEATURES]


def init_params(key):
    """Deterministic synthetic parameters matching the nn.Linear shapes.

    Weights are stored (in_features, out_features) in bf16 (the kernel's feed
    dtype); biases stay f32 (added onto the f32 accumulator). The final layer
    is zero-padded to 128 output columns ONCE here (lane-dense logits store),
    not per forward call.
    """
    k1, k2, k3, k4, k5, k6 = jax.random.split(key, 6)

    def lin(kw, kb, fan_in, fan_out):
        bound = 1.0 / jnp.sqrt(fan_in)
        w = jax.random.uniform(kw, (fan_in, fan_out), jnp.float32, -bound, bound)
        b = jax.random.uniform(kb, (1, fan_out), jnp.float32, -bound, bound)
        return w.astype(jnp.bfloat16), b

    w1, b1 = lin(k1, k2, IN_FEATURES, HIDDEN)
    w2, b2 = lin(k3, k4, HIDDEN, HIDDEN)
    w3, b3 = lin(k5, k6, HIDDEN, OUT_FEATURES)

    # Lane-dense final layer: pad (512,10)/(1,10) -> (512,128)/(1,128) with zeros.
    w3p = jnp.zeros((HIDDEN, OUT_PADDED), w3.dtype).at[:, :OUT_FEATURES].set(w3)
    b3p = jnp.zeros((1, OUT_PADDED), b3.dtype).at[:, :OUT_FEATURES].set(b3)
    return (w1, b1, w2, b2, w3p, b3p)


def reference_forward(x_nchw, params):
    """Same bf16-feed / f32-accumulate math, in plain JAX."""
    w1, b1, w2, b2, w3p, b3p = params
    x = x_nchw.reshape(x_nchw.shape[0], -1).astype(jnp.bfloat16)
    h1 = jnp.maximum(jnp.dot(x, w1, preferred_element_type=jnp.float32) + b1, 0.0)
    h1 = h1.astype(jnp.bfloat16)
    h2 = jnp.maximum(jnp.dot(h1, w2, preferred_element_type=jnp.float32) + b2, 0.0)
    h2 = h2.astype(jnp.bfloat16)
    logits = jnp.dot(h2, w3p, preferred_element_type=jnp.float32) + b3p
    return logits[:, :OUT_FEATURES]


if __name__ == "__main__":
    key = jax.random.PRNGKey(0)
    kx, kp = jax.random.split(key)

    B = 32  # small batch; exercises the multi-block (2-tile) grid path
    x = jax.random.normal(kx, (B, 1, 28, 28), dtype=jnp.float32)
    params = init_params(kp)

    fwd = jax.jit(neural_net_forward)
    logits = fwd(x, params)
    logits = jax.block_until_ready(logits)

    ref = reference_forward(x, params)
    assert logits.shape == (B, OUT_FEATURES)
    assert jnp.allclose(logits, ref, atol=1e-2, rtol=1e-2), "mismatch vs reference"

    print("KERNEL_OK")
</pallas_src>

<mosaic_0001>
module attributes {stable_mosaic.version = 11 : i64} {
  func.func @mlp_kernel(%arg0: i32, %arg1: memref<16x784xf32, #tpu.memory_space<vmem>>, %arg2: memref<784x512xbf16, #tpu.memory_space<vmem>>, %arg3: memref<1x512xf32, #tpu.memory_space<vmem>>, %arg4: memref<512x512xbf16, #tpu.memory_space<vmem>>, %arg5: memref<1x512xf32, #tpu.memory_space<vmem>>, %arg6: memref<512x128xbf16, #tpu.memory_space<vmem>>, %arg7: memref<1x128xf32, #tpu.memory_space<vmem>>, %arg8: memref<16x128xf32, #tpu.memory_space<vmem>>) attributes {dimension_semantics = [#tpu.dimension_semantics<parallel>], iteration_bounds = array<i64: 2>, scalar_prefetch = 0 : i64, scratch_operands = 0 : i64, tpu.core_type = #tpu.core_type<tc>, window_params = [{transform_indices = @transform_0, window_bounds = array<i64: 16, 784>}, {pipeline_mode = #tpu.pipeline_mode<synchronous>, transform_indices = @transform_1, window_bounds = array<i64: 784, 512>}, {pipeline_mode = #tpu.pipeline_mode<synchronous>, transform_indices = @transform_2, window_bounds = array<i64: 1, 512>}, {pipeline_mode = #tpu.pipeline_mode<synchronous>, transform_indices = @transform_3, window_bounds = array<i64: 512, 512>}, {pipeline_mode = #tpu.pipeline_mode<synchronous>, transform_indices = @transform_4, window_bounds = array<i64: 1, 512>}, {pipeline_mode = #tpu.pipeline_mode<synchronous>, transform_indices = @transform_5, window_bounds = array<i64: 512, 128>}, {pipeline_mode = #tpu.pipeline_mode<synchronous>, transform_indices = @transform_6, window_bounds = array<i64: 1, 128>}, {transform_indices = @transform_7, window_bounds = array<i64: 16, 128>}]} {
    %c0 = arith.constant 0 : index
    %c0_0 = arith.constant 0 : index
    %0 = vector.load %arg1[%c0, %c0_0] : memref<16x784xf32, #tpu.memory_space<vmem>>, vector<16x784xf32>
    %1 = arith.truncf %0 : vector<16x784xf32> to vector<16x784xbf16>
    %c0_1 = arith.constant 0 : index
    %c0_2 = arith.constant 0 : index
    %2 = vector.load %arg2[%c0_1, %c0_2] : memref<784x512xbf16, #tpu.memory_space<vmem>>, vector<784x512xbf16>
    %cst = arith.constant dense<0.000000e+00> : vector<16x512xf32>
    %3 = tpu.matmul %1, %2, %cst {dimension_numbers = #tpu.dot_dimension_numbers<[1], [0], [0], [1], [0, 0, 1, 1], [], []>} : vector<16x784xbf16>, vector<784x512xbf16>, vector<16x512xf32> -> vector<16x512xf32>
    %c0_3 = arith.constant 0 : index
    %c0_4 = arith.constant 0 : index
    %4 = vector.load %arg3[%c0_3, %c0_4] : memref<1x512xf32, #tpu.memory_space<vmem>>, vector<1x512xf32>
    %5 = vector.broadcast %4 : vector<1x512xf32> to vector<16x512xf32>
    %6 = arith.addf %3, %5 : vector<16x512xf32>
    %cst_5 = arith.constant 0.000000e+00 : f32
    %7 = vector.broadcast %cst_5 : f32 to vector<16x512xf32>
    %8 = arith.maximumf %6, %7 : vector<16x512xf32>
    %9 = arith.truncf %8 : vector<16x512xf32> to vector<16x512xbf16>
    %c0_6 = arith.constant 0 : index
    %c0_7 = arith.constant 0 : index
    %10 = vector.load %arg4[%c0_6, %c0_7] : memref<512x512xbf16, #tpu.memory_space<vmem>>, vector<512x512xbf16>
    %cst_8 = arith.constant dense<0.000000e+00> : vector<16x512xf32>
    %11 = tpu.matmul %9, %10, %cst_8 {dimension_numbers = #tpu.dot_dimension_numbers<[1], [0], [0], [1], [0, 0, 1, 1], [], []>} : vector<16x512xbf16>, vector<512x512xbf16>, vector<16x512xf32> -> vector<16x512xf32>
    %c0_9 = arith.constant 0 : index
    %c0_10 = arith.constant 0 : index
    %12 = vector.load %arg5[%c0_9, %c0_10] : memref<1x512xf32, #tpu.memory_space<vmem>>, vector<1x512xf32>
    %13 = vector.broadcast %12 : vector<1x512xf32> to vector<16x512xf32>
    %14 = arith.addf %11, %13 : vector<16x512xf32>
    %cst_11 = arith.constant 0.000000e+00 : f32
    %15 = vector.broadcast %cst_11 : f32 to vector<16x512xf32>
    %16 = arith.maximumf %14, %15 : vector<16x512xf32>
    %17 = arith.truncf %16 : vector<16x512xf32> to vector<16x512xbf16>
    %c0_12 = arith.constant 0 : index
    %c0_13 = arith.constant 0 : index
    %18 = vector.load %arg6[%c0_12, %c0_13] : memref<512x128xbf16, #tpu.memory_space<vmem>>, vector<512x128xbf16>
    %cst_14 = arith.constant dense<0.000000e+00> : vector<16x128xf32>
    %19 = tpu.matmul %17, %18, %cst_14 {dimension_numbers = #tpu.dot_dimension_numbers<[1], [0], [0], [1], [0, 0, 1, 1], [], []>} : vector<16x512xbf16>, vector<512x128xbf16>, vector<16x128xf32> -> vector<16x128xf32>
    %c0_15 = arith.constant 0 : index
    %c0_16 = arith.constant 0 : index
    %20 = vector.load %arg7[%c0_15, %c0_16] : memref<1x128xf32, #tpu.memory_space<vmem>>, vector<1x128xf32>
    %21 = vector.broadcast %20 : vector<1x128xf32> to vector<16x128xf32>
    %22 = arith.addf %19, %21 : vector<16x128xf32>
    %c0_17 = arith.constant 0 : index
    %c0_18 = arith.constant 0 : index
    %23 = vector.load %arg8[%c0_17, %c0_18] : memref<16x128xf32, #tpu.memory_space<vmem>>, vector<16x128xf32>
    tpu.vector_store %arg8[%c0_17, %c0_18], %22 {strides = array<i32>} : memref<16x128xf32, #tpu.memory_space<vmem>>, vector<16x128xf32>,
    return
  }
  func.func @transform_0(%arg0: i32) -> (i32, i32) {
    %c0_i32 = arith.constant 0 : i32
    %c0_i32_0 = arith.constant 0 : i32
    return %arg0, %c0_i32 : i32, i32
  }
  func.func @transform_1(%arg0: i32) -> (i32, i32) {
    %c0_i32 = arith.constant 0 : i32
    %c0_i32_0 = arith.constant 0 : i32
    %c0_i32_1 = arith.constant 0 : i32
    return %c0_i32, %c0_i32_0 : i32, i32
  }
  func.func @transform_2(%arg0: i32) -> (i32, i32) {
    %c0_i32 = arith.constant 0 : i32
    %c0_i32_0 = arith.constant 0 : i32
    %c0_i32_1 = arith.constant 0 : i32
    return %c0_i32, %c0_i32_0 : i32, i32
  }
  func.func @transform_3(%arg0: i32) -> (i32, i32) {
    %c0_i32 = arith.constant 0 : i32
    %c0_i32_0 = arith.constant 0 : i32
    %c0_i32_1 = arith.constant 0 : i32
    return %c0_i32, %c0_i32_0 : i32, i32
  }
  func.func @transform_4(%arg0: i32) -> (i32, i32) {
    %c0_i32 = arith.constant 0 : i32
    %c0_i32_0 = arith.constant 0 : i32
    %c0_i32_1 = arith.constant 0 : i32
    return %c0_i32, %c0_i32_0 : i32, i32
  }
  func.func @transform_5(%arg0: i32) -> (i32, i32) {
    %c0_i32 = arith.constant 0 : i32
    %c0_i32_0 = arith.constant 0 : i32
    %c0_i32_1 = arith.constant 0 : i32
    return %c0_i32, %c0_i32_0 : i32, i32
  }
  func.func @transform_6(%arg0: i32) -> (i32, i32) {
    %c0_i32 = arith.constant 0 : i32
    %c0_i32_0 = arith.constant 0 : i32
    %c0_i32_1 = arith.constant 0 : i32
    return %c0_i32, %c0_i32_0 : i32, i32
  }
  func.func @transform_7(%arg0: i32) -> (i32, i32) {
    %c0_i32 = arith.constant 0 : i32
    %c0_i32_0 = arith.constant 0 : i32
    return %arg0, %c0_i32 : i32, i32
  }
}

</mosaic_0001>

<llo_original>
// kernel: neural_net_forward.1
$region0: #{neural_net_forward.1}
  #allocation0 [shape = 'u32[]', space=smem, size = 0x4, offset = 0x4, fixed_abs, tag = 'smem constant byte address 0x4 - core index']
  #allocation1 [shape = 'u32[144,128]{1,0:T(1,128)}', space=vmem, size = 0x12000, scoped, tag = 'internal scratch']
  %s0 = inlined_call_operand.vmem [shape: f32[32,784], index: 0, kind: input, shape index: {}]
  %s1 = inlined_call_operand.hbm [shape: bf16[784,512], index: 1, kind: input, shape index: {}]
  %s2 = inlined_call_operand.vmem [shape: f32[1,512], index: 2, kind: input, shape index: {}]
  %s3 = inlined_call_operand.hbm [shape: bf16[512,512], index: 3, kind: input, shape index: {}]
  %s4 = inlined_call_operand.vmem [shape: f32[1,512], index: 4, kind: input, shape index: {}]
  %s5 = inlined_call_operand.vmem [shape: bf16[512,128], index: 5, kind: input, shape index: {}]
  %s6 = inlined_call_operand.vmem [shape: f32[1,128], index: 6, kind: input, shape index: {}]
  %s7 = inlined_call_operand.vmem [shape: f32[32,128], index: 7, kind: output, shape index: {}]
  %s8 = sld [smem:[#allocation0]]
  $region69: #{neural_net_forward.1} parent=0
    _
  %s10 = ssub.s32 1, %s8
  %s11 = scalar_select 0, %s10, %s8
  $region1: #{neural_net_forward.1} parent=0
    #allocation2 [shape = 'u8[802816]{0}', space=vmem, size = 0xc4000, scoped, tag = 'input window, operand 1, single buffered']
    #allocation3 [shape = 's32[2]{0}', space=sflag, size = 0x8, scoped, tag = 'scoped memory for neural_net_forward.1']
    #allocation4 [shape = 'u8[524288]{0}', space=vmem, size = 0x80000, scoped, tag = 'input window, operand 3, single buffered']
    #allocation5 [shape = 's32[1]{0}', space=sflag, size = 0x4, scoped, tag = 'scoped memory for neural_net_forward.1']
    %12 = vsyncpa [#allocation3], 0
    %13 = vsyncpa [#allocation5], 0
    loop: start=0, step=1, limit=4
    $region2: #{neural_net_forward.1} parent=1 // loop_pre_header
      _
    $region3: #{neural_net_forward.1} parent=1 // loop_header
      %s15 = sphi 0, %s19
      %p16 = scmp.ge.s32.totalorder %s15, 4
      %s25 = sphi 0, %s27
      %s28 = sphi 0, %s25
      %s29 = sphi 0, %s28
      %s45 = sphi 0, %s29
      %s49 = sphi 0, %s49
      %s51 = sphi 0, %s49
      %s52 = sphi 0, %s51
      %s66 = sphi 0, %s52
      %s70 = sphi 0, %s70
      %s72 = sphi 0, %s70
      %s73 = sphi 0, %s72
      %s87 = sphi 0, %s73
      %s91 = sphi 0, %s91
      %s93 = sphi 0, %s91
      %s94 = sphi 0, %s93
      %s108 = sphi 0, %s94
      %s112 = sphi 0, %s112
      %s114 = sphi 0, %s112
      %s115 = sphi 0, %s114
      %s129 = sphi 0, %s115
      %s133 = sphi 0, %s133
      %s135 = sphi 0, %s133
      %s136 = sphi 0, %s135
      %s150 = sphi 0, %s136
      %s154 = sphi 0, %s154
      %s156 = sphi 0, %s154
      %s157 = sphi 0, %s156
      %s171 = sphi 0, %s157
      %s177 = sphi 0, %s179
      %s180 = sphi 0, %s177
      %s181 = sphi 0, %s180
      %s197 = sphi 0, %s181
    $region4: #{neural_net_forward.1} parent=1 // loop_header_branch
      %18 = sbr.rel (%p16) target = $region8
    $region5: #{neural_net_forward.1} parent=1 // loop_body
      %s20 = ssub.s32 %s15, 1
      %s21 = ssub.s32 %s15, 2
      %s22 = sadd.s32 %s15, 1
      %s23 = ssub.s32 %s15, %s22
      %p24 = scmp.eq.s32.totalorder %s23, 0
      %s26 = sadd.s32 %s25, 1
      %s27 = scalar_select %p24, %s25, %s26
      %p30 = pneg %p24
      %p31 = scmp.eq.s32.totalorder %s15, 1
      %p32 = por %p30, %p31
      %p33 = scmp.ne.s32.totalorder %s25, %s28
      %p34 = scmp.eq.s32.totalorder %s15, 0
      %p35 = por %p33, %p34
      %p36 = scmp.ne.s32.totalorder %s25, %s28
      %p37 = scmp.eq.s32.totalorder %s20, 1
      %p38 = por %p36, %p37
      %p39 = scmp.ne.s32.totalorder %s28, %s29
      %p40 = scmp.eq.s32.totalorder %s20, 0
      %p41 = por %p39, %p40
      %p42 = scmp.ne.s32.totalorder %s28, %s29
      %p43 = scmp.eq.s32.totalorder %s21, 1
      %p44 = por %p42, %p43
      %p46 = scmp.ne.s32.totalorder %s29, %s45
      %p47 = scmp.eq.s32.totalorder %s21, 0
      %p48 = por %p46, %p47
      %s50 = sadd.s32 %s49, 1
      %p53 = scmp.eq.s32.totalorder %s15, 1
      %p54 = scmp.ne.s32.totalorder %s49, %s51
      %p55 = scmp.eq.s32.totalorder %s15, 0
      %p56 = por %p54, %p55
      %p57 = scmp.ne.s32.totalorder %s49, %s51
      %p58 = scmp.eq.s32.totalorder %s20, 1
      %p59 = por %p57, %p58
      %p60 = scmp.ne.s32.totalorder %s51, %s52
      %p61 = scmp.eq.s32.totalorder %s20, 0
      %p62 = por %p60, %p61
      %p63 = scmp.ne.s32.totalorder %s51, %s52
      %p64 = scmp.eq.s32.totalorder %s21, 1
      %p65 = por %p63, %p64
      %p67 = scmp.ne.s32.totalorder %s52, %s66
      %p68 = scmp.eq.s32.totalorder %s21, 0
      %p69 = por %p67, %p68
      %s71 = sadd.s32 %s70, 1
      %p74 = scmp.eq.s32.totalorder %s15, 1
      %p75 = scmp.ne.s32.totalorder %s70, %s72
      %p76 = scmp.eq.s32.totalorder %s15, 0
      %p77 = por %p75, %p76
      %p78 = scmp.ne.s32.totalorder %s70, %s72
      %p79 = scmp.eq.s32.totalorder %s20, 1
      %p80 = por %p78, %p79
      %p81 = scmp.ne.s32.totalorder %s72, %s73
      %p82 = scmp.eq.s32.totalorder %s20, 0
      %p83 = por %p81, %p82
      %p84 = scmp.ne.s32.totalorder %s72, %s73
      %p85 = scmp.eq.s32.totalorder %s21, 1
      %p86 = por %p84, %p85
      %p88 = scmp.ne.s32.totalorder %s73, %s87
      %p89 = scmp.eq.s32.totalorder %s21, 0
      %p90 = por %p88, %p89
      %s92 = sadd.s32 %s91, 1
      %p95 = scmp.eq.s32.totalorder %s15, 1
      %p96 = scmp.ne.s32.totalorder %s91, %s93
      %p97 = scmp.eq.s32.totalorder %s15, 0
      %p98 = por %p96, %p97
      %p99 = scmp.ne.s32.totalorder %s91, %s93
      %p100 = scmp.eq.s32.totalorder %s20, 1
      %p101 = por %p99, %p100
      %p102 = scmp.ne.s32.totalorder %s93, %s94
      %p103 = scmp.eq.s32.totalorder %s20, 0
      %p104 = por %p102, %p103
      %p105 = scmp.ne.s32.totalorder %s93, %s94
      %p106 = scmp.eq.s32.totalorder %s21, 1
      %p107 = por %p105, %p106
      %p109 = scmp.ne.s32.totalorder %s94, %s108
      %p110 = scmp.eq.s32.totalorder %s21, 0
      %p111 = por %p109, %p110
      %s113 = sadd.s32 %s112, 1
      %p116 = scmp.eq.s32.totalorder %s15, 1
      %p117 = scmp.ne.s32.totalorder %s112, %s114
      %p118 = scmp.eq.s32.totalorder %s15, 0
      %p119 = por %p117, %p118
      %p120 = scmp.ne.s32.totalorder %s112, %s114
      %p121 = scmp.eq.s32.totalorder %s20, 1
      %p122 = por %p120, %p121
      %p123 = scmp.ne.s32.totalorder %s114, %s115
      %p124 = scmp.eq.s32.totalorder %s20, 0
      %p125 = por %p123, %p124
      %p126 = scmp.ne.s32.totalorder %s114, %s115
      %p127 = scmp.eq.s32.totalorder %s21, 1
      %p128 = por %p126, %p127
      %p130 = scmp.ne.s32.totalorder %s115, %s129
      %p131 = scmp.eq.s32.totalorder %s21, 0
      %p132 = por %p130, %p131
      %s134 = sadd.s32 %s133, 1
      %p137 = scmp.eq.s32.totalorder %s15, 1
      %p138 = scmp.ne.s32.totalorder %s133, %s135
      %p139 = scmp.eq.s32.totalorder %s15, 0
      %p140 = por %p138, %p139
      %p141 = scmp.ne.s32.totalorder %s133, %s135
      %p142 = scmp.eq.s32.totalorder %s20, 1
      %p143 = por %p141, %p142
      %p144 = scmp.ne.s32.totalorder %s135, %s136
      %p145 = scmp.eq.s32.totalorder %s20, 0
      %p146 = por %p144, %p145
      %p147 = scmp.ne.s32.totalorder %s135, %s136
      %p148 = scmp.eq.s32.totalorder %s21, 1
      %p149 = por %p147, %p148
      %p151 = scmp.ne.s32.totalorder %s136, %s150
      %p152 = scmp.eq.s32.totalorder %s21, 0
      %p153 = por %p151, %p152
      %s155 = sadd.s32 %s154, 1
      %p158 = scmp.eq.s32.totalorder %s15, 1
      %p159 = scmp.ne.s32.totalorder %s154, %s156
      %p160 = scmp.eq.s32.totalorder %s15, 0
      %p161 = por %p159, %p160
      %p162 = scmp.ne.s32.totalorder %s154, %s156
      %p163 = scmp.eq.s32.totalorder %s20, 1
      %p164 = por %p162, %p163
      %p165 = scmp.ne.s32.totalorder %s156, %s157
      %p166 = scmp.eq.s32.totalorder %s20, 0
      %p167 = por %p165, %p166
      %p168 = scmp.ne.s32.totalorder %s156, %s157
      %p169 = scmp.eq.s32.totalorder %s21, 1
      %p170 = por %p168, %p169
      %p172 = scmp.ne.s32.totalorder %s157, %s171
      %p173 = scmp.eq.s32.totalorder %s21, 0
      %p174 = por %p172, %p173
      %s175 = ssub.s32 %s15, %s22
      %p176 = scmp.eq.s32.totalorder %s175, 0
      %s178 = sadd.s32 %s177, 1
      %s179 = scalar_select %p176, %s177, %s178
      %p182 = pneg %p176
      %p183 = scmp.eq.s32.totalorder %s15, 1
      %p184 = por %p182, %p183
      %p185 = scmp.ne.s32.totalorder %s177, %s180
      %p186 = scmp.eq.s32.totalorder %s15, 0
      %p187 = por %p185, %p186
      %p188 = scmp.ne.s32.totalorder %s177, %s180
      %p189 = scmp.eq.s32.totalorder %s20, 1
      %p190 = por %p188, %p189
      %p191 = scmp.ne.s32.totalorder %s180, %s181
      %p192 = scmp.eq.s32.totalorder %s20, 0
      %p193 = por %p191, %p192
      %p194 = scmp.ne.s32.totalorder %s180, %s181
      %p195 = scmp.eq.s32.totalorder %s21, 1
      %p196 = por %p194, %p195
      %p198 = scmp.ne.s32.totalorder %s181, %s197
      %p199 = scmp.eq.s32.totalorder %s21, 0
      %p200 = por %p198, %p199
      %p201 = scmp.le.s32.totalorder 1, %s15
      %p202 = scmp.lt.s32.totalorder %s15, 3
      %p203 = pnand %p201, %p202
      %p204 = pneg %p203
      // Predicated region
      $region9: #{neural_net_forward.1} parent=5 // pred_check
        _
      $region10: #{neural_net_forward.1} parent=5 // pred_check_branch
        %206 = sbr.rel (%p203) target = $region12
      $region11: #{neural_net_forward.1} parent=5 // pred_region
        %s207 = ssub.s32 %s15, 1
        // Predicated region
        $region13: #{neural_net_forward.1} parent=11 // pred_check
          %p208 = pneg %p62
        $region14: #{neural_net_forward.1} parent=11 // pred_check_branch
          %210 = sbr.rel (%p208) target = $region16
        $region15: #{neural_net_forward.1} parent=11 // pred_region
          %s212 = ssub.s32 25088, 25088
          %213 = vsyncadd [#allocation3], %s212
          %s214 = sshll.u32 [#allocation2], 4
          %s215 = int_to_ptr.vmem [resolvable:$true] %s214
          %220 = dma.hbm_to_vmem [thread:$0]  %s1, 25088, %s215, [#allocation3], 256, 256, 16
        $region16: #{neural_net_forward.1} parent=11 // pred_fallthru
          _
        // Predicated region
        $region17: #{neural_net_forward.1} parent=11 // pred_check
          %p221 = pneg %p83
        $region18: #{neural_net_forward.1} parent=11 // pred_check_branch
          %223 = sbr.rel (%p221) target = $region20
        $region19: #{neural_net_forward.1} parent=11 // pred_region
          _
        $region20: #{neural_net_forward.1} parent=11 // pred_fallthru
          _
        // Predicated region
        $region21: #{neural_net_forward.1} parent=11 // pred_check
          %p224 = pneg %p104
        $region22: #{neural_net_forward.1} parent=11 // pred_check_branch
          %226 = sbr.rel (%p224) target = $region24
        $region23: #{neural_net_forward.1} parent=11 // pred_region
          %s228 = ssub.s32 16384, 16384
          %229 = vsyncadd [#allocation5], %s228
          %s230 = sshll.u32 [#allocation4], 4
          %s231 = int_to_ptr.vmem [resolvable:$true] %s230
          %236 = dma.hbm_to_vmem [thread:$0]  %s3, 16384, %s231, [#allocation5], 256, 256, 16
        $region24: #{neural_net_forward.1} parent=11 // pred_fallthru
          _
        // Predicated region
        $region25: #{neural_net_forward.1} parent=11 // pred_check
          %p237 = pneg %p125
        $region26: #{neural_net_forward.1} parent=11 // pred_check_branch
          %239 = sbr.rel (%p237) target = $region28
        $region27: #{neural_net_forward.1} parent=11 // pred_region
          _
        $region28: #{neural_net_forward.1} parent=11 // pred_fallthru
          _
        // Predicated region
        $region29: #{neural_net_forward.1} parent=11 // pred_check
          %p240 = pneg %p146
        $region30: #{neural_net_forward.1} parent=11 // pred_check_branch
          %242 = sbr.rel (%p240) target = $region32
        $region31: #{neural_net_forward.1} parent=11 // pred_region
          _
        $region32: #{neural_net_forward.1} parent=11 // pred_fallthru
          _
        // Predicated region
        $region33: #{neural_net_forward.1} parent=11 // pred_check
          %p243 = pneg %p167
        $region34: #{neural_net_forward.1} parent=11 // pred_check_branch
          %245 = sbr.rel (%p243) target = $region36
        $region35: #{neural_net_forward.1} parent=11 // pred_region
          _
        $region36: #{neural_net_forward.1} parent=11 // pred_fallthru
          _
      $region12: #{neural_net_forward.1} parent=5 // pred_fallthru
        _
      %p246 = scmp.lt.s32.totalorder %s15, 2
      // Predicated region
      $region37: #{neural_net_forward.1} parent=5 // pred_check
        %p247 = pneg %p246
      $region38: #{neural_net_forward.1} parent=5 // pred_check_branch
        %249 = sbr.rel (%p247) target = $region40
      $region39: #{neural_net_forward.1} parent=5 // pred_region
        // Predicated region
        $region41: #{neural_net_forward.1} parent=39 // pred_check
          %p250 = pneg %p35
        $region42: #{neural_net_forward.1} parent=39 // pred_check_branch
          %252 = sbr.rel (%p250) target = $region44
        $region43: #{neural_net_forward.1} parent=39 // pred_region
          %s253 = smul.u32 2, %s15
          %p254 = scmp.lt.s32.totalorder %s253, 3
          %s255 = scalar_select %p254, %s253, 3
          %s256 = smul.addr %s255, 7
          %s257 = smul.addr %s256, 8
          %s258 = scalar_lea.vmem %s0, %s257
          %s259 = smul.u32 2, %s15
        $region44: #{neural_net_forward.1} parent=39 // pred_fallthru
          _
      $region40: #{neural_net_forward.1} parent=5 // pred_fallthru
        _
      %p260 = scmp.le.s32.totalorder 1, %s15
      %p261 = scmp.lt.s32.totalorder %s15, 3
      %p262 = pnand %p260, %p261
      %p263 = pneg %p262
      // Predicated region
      $region45: #{neural_net_forward.1} parent=5 // pred_check
        _
      $region46: #{neural_net_forward.1} parent=5 // pred_check_branch
        %265 = sbr.rel (%p262) target = $region48
      $region47: #{neural_net_forward.1} parent=5 // pred_region
        %s266 = ssub.s32 %s15, 1
        // Predicated region
        $region49: #{neural_net_forward.1} parent=47 // pred_check
          %p267 = pneg %p62
        $region50: #{neural_net_forward.1} parent=47 // pred_check_branch
          %269 = sbr.rel (%p267) target = $region52
        $region51: #{neural_net_forward.1} parent=47 // pred_region
          %270 = dma.done [#allocation3], 25088
        $region52: #{neural_net_forward.1} parent=47 // pred_fallthru
          _
        // Predicated region
        $region53: #{neural_net_forward.1} parent=47 // pred_check
          %p271 = pneg %p104
        $region54: #{neural_net_forward.1} parent=47 // pred_check_branch
          %273 = sbr.rel (%p271) target = $region56
        $region55: #{neural_net_forward.1} parent=47 // pred_region
          %274 = dma.done [#allocation5], 16384
        $region56: #{neural_net_forward.1} parent=47 // pred_fallthru
          _
        %s275 = smul.u32 2, %s20
        %p276 = scmp.lt.s32.totalorder %s275, 3
        %s277 = scalar_select %p276, %s275, 3
        %s278 = smul.addr %s277, 7
        %s279 = smul.addr %s278, 8
        %s280 = scalar_lea.vmem %s0, %s279
        %p281 = pneg %p41
        %p282 = pneg %p38
        %p283 = pneg %p62
        %p284 = pneg %p59
        %p285 = pneg %p83
        %p286 = pneg %p80
        %p287 = pneg %p104
        %p288 = pneg %p101
        %p289 = pneg %p125
        %p290 = pneg %p122
        %p291 = pneg %p146
        %p292 = pneg %p143
        %p293 = pneg %p167
        %p294 = pneg %p164
        %p295 = pneg %p193
        %p296 = pneg %p190
        %s297 = smul.u32 2, %s20
        %p298 = scmp.lt.s32.totalorder %s297, 3
        %s299 = scalar_select %p298, %s297, 3
        %s300 = smul.addr %s299, 8
        %s301 = scalar_lea.vmem %s7, %s300
        %s302 = smul.u32 2, %s20
        %p303 = scmp.lt.s32.totalorder %s302, 3
        %s304 = scalar_select %p303, %s302, 3
        %s305 = smul.addr %s304, 7
        %s306 = smul.addr %s305, 8
        %s307 = scalar_lea.vmem %s0, %s306
        %s308 = smul.u32 2, %s20
        %s309 = smul.u32 2, %s20
        %p310 = scmp.lt.s32.totalorder %s309, 3
        %s311 = scalar_select %p310, %s309, 3
        %s312 = smul.addr %s311, 8
        %s313 = scalar_lea.vmem %s7, %s312
        %s314 = smul.u32 2, %s20
        %v316 = vld [vmem:[%s307] sm:$0xff]
        %v317 = vld [vmem:[%s307 + $0x8] sm:$0xff]
        %v318 = vld [vmem:[%s307 + $0x10] sm:$0xff]
        %v319 = vld [vmem:[%s307 + $0x18] sm:$0xff]
        %v320 = vld [vmem:[%s307 + $0x20] sm:$0xff]
        %v321 = vld [vmem:[%s307 + $0x28] sm:$0xff]
        %v322 = vld [vmem:[%s307 + $0x30] sm:$0xff]
        %v323 = vld [vmem:[%s307 + $0x38] sm:$0xff]
        %v324 = vld [vmem:[%s307 + $0x40] sm:$0xff]
        %v325 = vld [vmem:[%s307 + $0x48] sm:$0xff]
        %v326 = vld [vmem:[%s307 + $0x50] sm:$0xff]
        %v327 = vld [vmem:[%s307 + $0x58] sm:$0xff]
        %v328 = vld [vmem:[%s307 + $0x60] sm:$0xff]
        %v329 = vld [vmem:[%s307 + $0x68] sm:$0xff]
        %v330 = vpack.c.bf16 %v323, %v316
        %v331 = vpack.c.bf16 %v324, %v317
        %v332 = vpack.c.bf16 %v325, %v318
        %v333 = vpack.c.bf16 %v326, %v319
        %v334 = vpack.c.bf16 %v327, %v320
        %v335 = vpack.c.bf16 %v328, %v321
        %v336 = vpack.c.bf16 %v329, %v322
        %v337 = vld [vmem:[#allocation2] sm:$0xff]
        %v338 = vld [vmem:[#allocation2 + $0x8] sm:$0xff]
        %v339 = vld [vmem:[#allocation2 + $0x10] sm:$0xff]
        %v340 = vld [vmem:[#allocation2 + $0x18] sm:$0xff]
        %v341 = vld [vmem:[#allocation2 + $0x20] sm:$0xff]
        %v342 = vld [vmem:[#allocation2 + $0x28] sm:$0xff]
        %v343 = vld [vmem:[#allocation2 + $0x30] sm:$0xff]
        %v344 = vld [vmem:[#allocation2 + $0x38] sm:$0xff]
        %v345 = vld [vmem:[#allocation2 + $0x40] sm:$0xff]
        %v346 = vld [vmem:[#allocation2 + $0x48] sm:$0xff]
        %v347 = vld [vmem:[#allocation2 + $0x50] sm:$0xff]
        %v348 = vld [vmem:[#allocation2 + $0x58] sm:$0xff]
        %v349 = vld [vmem:[#allocation2 + $0x60] sm:$0xff]
        %v350 = vld [vmem:[#allocation2 + $0x68] sm:$0xff]
        %v351 = vld [vmem:[#allocation2 + $0x70] sm:$0xff]
        %v352 = vld [vmem:[#allocation2 + $0x78] sm:$0xff]
        %v353 = vld [vmem:[#allocation2 + $0x80] sm:$0xff]
        %v354 = vld [vmem:[#allocation2 + $0x88] sm:$0xff]
        %v355 = vld [vmem:[#allocation2 + $0x90] sm:$0xff]
        %v356 = vld [vmem:[#allocation2 + $0x98] sm:$0xff]
        %v357 = vld [vmem:[#allocation2 + $0xa0] sm:$0xff]
        %v358 = vld [vmem:[#allocation2 + $0xa8] sm:$0xff]
        %v359 = vld [vmem:[#allocation2 + $0xb0] sm:$0xff]
        %v360 = vld [vmem:[#allocation2 + $0xb8] sm:$0xff]
        %v361 = vld [vmem:[#allocation2 + $0xc0] sm:$0xff]
        %v362 = vld [vmem:[#allocation2 + $0xc8] sm:$0xff]
        %v363 = vld [vmem:[#allocation2 + $0xd0] sm:$0xff]
        %v364 = vld [vmem:[#allocation2 + $0xd8] sm:$0xff]
        %v365 = vld [vmem:[#allocation2 + $0xe0] sm:$0xff]
        %v366 = vld [vmem:[#allocation2 + $0xe8] sm:$0xff]
        %v367 = vld [vmem:[#allocation2 + $0xf0] sm:$0xff]
        %v368 = vld [vmem:[#allocation2 + $0xf8] sm:$0xff]
        %v369 = vld [vmem:[#allocation2 + $0x100] sm:$0xff]
        %v370 = vld [vmem:[#allocation2 + $0x108] sm:$0xff]
        %v371 = vld [vmem:[#allocation2 + $0x110] sm:$0xff]
        %v372 = vld [vmem:[#allocation2 + $0x118] sm:$0xff]
        %v373 = vld [vmem:[#allocation2 + $0x120] sm:$0xff]
        %v374 = vld [vmem:[#allocation2 + $0x128] sm:$0xff]
        %v375 = vld [vmem:[#allocation2 + $0x130] sm:$0xff]
        %v376 = vld [vmem:[#allocation2 + $0x138] sm:$0xff]
        %v377 = vld [vmem:[#allocation2 + $0x140] sm:$0xff]
        %v378 = vld [vmem:[#allocation2 + $0x148] sm:$0xff]
        %v379 = vld [vmem:[#allocation2 + $0x150] sm:$0xff]
        %v380 = vld [vmem:[#allocation2 + $0x158] sm:$0xff]
        %v381 = vld [vmem:[#allocation2 + $0x160] sm:$0xff]
        %v382 = vld [vmem:[#allocation2 + $0x168] sm:$0xff]
        %v383 = vld [vmem:[#allocation2 + $0x170] sm:$0xff]
        %v384 = vld [vmem:[#allocation2 + $0x178] sm:$0xff]
        %v385 = vld [vmem:[#allocation2 + $0x180] sm:$0xff]
        %v386 = vld [vmem:[#allocation2 + $0x188] sm:$0xff]
        %v387 = vld [vmem:[#allocation2 + $0x190] sm:$0xff]
        %v388 = vld [vmem:[#allocation2 + $0x198] sm:$0xff]
        %v389 = vld [vmem:[#allocation2 + $0x1a0] sm:$0xff]
        %v390 = vld [vmem:[#allocation2 + $0x1a8] sm:$0xff]
        %v391 = vld [vmem:[#allocation2 + $0x1b0] sm:$0xff]
        %v392 = vld [vmem:[#allocation2 + $0x1b8] sm:$0xff]
        %v393 = vld [vmem:[#allocation2 + $0x1c0] sm:$0xff]
        %v394 = vld [vmem:[#allocation2 + $0x1c8] sm:$0xff]
        %v395 = vld [vmem:[#allocation2 + $0x1d0] sm:$0xff]
        %v396 = vld [vmem:[#allocation2 + $0x1d8] sm:$0xff]
        %v397 = vld [vmem:[#allocation2 + $0x1e0] sm:$0xff]
        %v398 = vld [vmem:[#allocation2 + $0x1e8] sm:$0xff]
        %v399 = vld [vmem:[#allocation2 + $0x1f0] sm:$0xff]
        %v400 = vld [vmem:[#allocation2 + $0x1f8] sm:$0xff]
        %v401 = vld [vmem:[#allocation2 + $0x200] sm:$0xff]
        %v402 = vld [vmem:[#allocation2 + $0x208] sm:$0xff]
        %v403 = vld [vmem:[#allocation2 + $0x210] sm:$0xff]
        %v404 = vld [vmem:[#allocation2 + $0x218] sm:$0xff]
        %v405 = vld [vmem:[#allocation2 + $0x220] sm:$0xff]
        %v406 = vld [vmem:[#allocation2 + $0x228] sm:$0xff]
        %v407 = vld [vmem:[#allocation2 + $0x230] sm:$0xff]
        %v408 = vld [vmem:[#allocation2 + $0x238] sm:$0xff]
        %v409 = vld [vmem:[#allocation2 + $0x240] sm:$0xff]
        %v410 = vld [vmem:[#allocation2 + $0x248] sm:$0xff]
        %v411 = vld [vmem:[#allocation2 + $0x250] sm:$0xff]
        %v412 = vld [vmem:[#allocation2 + $0x258] sm:$0xff]
        %v413 = vld [vmem:[#allocation2 + $0x260] sm:$0xff]
        %v414 = vld [vmem:[#allocation2 + $0x268] sm:$0xff]
        %v415 = vld [vmem:[#allocation2 + $0x270] sm:$0xff]
        %v416 = vld [vmem:[#allocation2 + $0x278] sm:$0xff]
        %v417 = vld [vmem:[#allocation2 + $0x280] sm:$0xff]
        %v418 = vld [vmem:[#allocation2 + $0x288] sm:$0xff]
        %v419 = vld [vmem:[#allocation2 + $0x290] sm:$0xff]
        %v420 = vld [vmem:[#allocation2 + $0x298] sm:$0xff]
        %v421 = vld [vmem:[#allocation2 + $0x2a0] sm:$0xff]
        %v422 = vld [vmem:[#allocation2 + $0x2a8] sm:$0xff]
        %v423 = vld [vmem:[#allocation2 + $0x2b0] sm:$0xff]
        %v424 = vld [vmem:[#allocation2 + $0x2b8] sm:$0xff]
        %v425 = vld [vmem:[#allocation2 + $0x2c0] sm:$0xff]
        %v426 = vld [vmem:[#allocation2 + $0x2c8] sm:$0xff]
        %v427 = vld [vmem:[#allocation2 + $0x2d0] sm:$0xff]
        %v428 = vld [vmem:[#allocation2 + $0x2d8] sm:$0xff]
        %v429 = vld [vmem:[#allocation2 + $0x2e0] sm:$0xff]
        %v430 = vld [vmem:[#allocation2 + $0x2e8] sm:$0xff]
        %v431 = vld [vmem:[#allocation2 + $0x2f0] sm:$0xff]
        %v432 = vld [vmem:[#allocation2 + $0x2f8] sm:$0xff]
        %v433 = vld [vmem:[#allocation2 + $0x300] sm:$0xff]
        %v434 = vld [vmem:[#allocation2 + $0x308] sm:$0xff]
        %v435 = vld [vmem:[#allocation2 + $0x310] sm:$0xff]
        %v436 = vld [vmem:[#allocation2 + $0x318] sm:$0xff]
        %v437 = vld [vmem:[#allocation2 + $0x320] sm:$0xff]
        %v438 = vld [vmem:[#allocation2 + $0x328] sm:$0xff]
        %v439 = vld [vmem:[#allocation2 + $0x330] sm:$0xff]
        %v440 = vld [vmem:[#allocation2 + $0x338] sm:$0xff]
        %v441 = vld [vmem:[#allocation2 + $0x340] sm:$0xff]
        %v442 = vld [vmem:[#allocation2 + $0x348] sm:$0xff]
        %v443 = vld [vmem:[#allocation2 + $0x350] sm:$0xff]
        %v444 = vld [vmem:[#allocation2 + $0x358] sm:$0xff]
        %v445 = vld [vmem:[#allocation2 + $0x360] sm:$0xff]
        %v446 = vld [vmem:[#allocation2 + $0x368] sm:$0xff]
        %v447 = vld [vmem:[#allocation2 + $0x370] sm:$0xff]
        %v448 = vld [vmem:[#allocation2 + $0x378] sm:$0xff]
        %v449 = vld [vmem:[#allocation2 + $0x380] sm:$0xff]
        %v450 = vld [vmem:[#allocation2 + $0x388] sm:$0xff]
        %v451 = vld [vmem:[#allocation2 + $0x390] sm:$0xff]
        %v452 = vld [vmem:[#allocation2 + $0x398] sm:$0xff]
        %v453 = vld [vmem:[#allocation2 + $0x3a0] sm:$0xff]
        %v454 = vld [vmem:[#allocation2 + $0x3a8] sm:$0xff]
        %v455 = vld [vmem:[#allocation2 + $0x3b0] sm:$0xff]
        %v456 = vld [vmem:[#allocation2 + $0x3b8] sm:$0xff]
        %v457 = vld [vmem:[#allocation2 + $0x3c0] sm:$0xff]
        %v458 = vld [vmem:[#allocation2 + $0x3c8] sm:$0xff]
        %v459 = vld [vmem:[#allocation2 + $0x3d0] sm:$0xff]
        %v460 = vld [vmem:[#allocation2 + $0x3d8] sm:$0xff]
        %v461 = vld [vmem:[#allocation2 + $0x3e0] sm:$0xff]
        %v462 = vld [vmem:[#allocation2 + $0x3e8] sm:$0xff]
        %v463 = vld [vmem:[#allocation2 + $0x3f0] sm:$0xff]
        %v464 = vld [vmem:[#allocation2 + $0x3f8] sm:$0xff]
        %v465 = vld [vmem:[#allocation2 + $0x400] sm:$0xff]
        %v466 = vld [vmem:[#allocation2 + $0x408] sm:$0xff]
        %v467 = vld [vmem:[#allocation2 + $0x410] sm:$0xff]
        %v468 = vld [vmem:[#allocation2 + $0x418] sm:$0xff]
        %v469 = vld [vmem:[#allocation2 + $0x420] sm:$0xff]
        %v470 = vld [vmem:[#allocation2 + $0x428] sm:$0xff]
        %v471 = vld [vmem:[#allocation2 + $0x430] sm:$0xff]
        %v472 = vld [vmem:[#allocation2 + $0x438] sm:$0xff]
        %v473 = vld [vmem:[#allocation2 + $0x440] sm:$0xff]
        %v474 = vld [vmem:[#allocation2 + $0x448] sm:$0xff]
        %v475 = vld [vmem:[#allocation2 + $0x450] sm:$0xff]
        %v476 = vld [vmem:[#allocation2 + $0x458] sm:$0xff]
        %v477 = vld [vmem:[#allocation2 + $0x460] sm:$0xff]
        %v478 = vld [vmem:[#allocation2 + $0x468] sm:$0xff]
        %v479 = vld [vmem:[#allocation2 + $0x470] sm:$0xff]
        %v480 = vld [vmem:[#allocation2 + $0x478] sm:$0xff]
        %v481 = vld [vmem:[#allocation2 + $0x480] sm:$0xff]
        %v482 = vld [vmem:[#allocation2 + $0x488] sm:$0xff]
        %v483 = vld [vmem:[#allocation2 + $0x490] sm:$0xff]
        %v484 = vld [vmem:[#allocation2 + $0x498] sm:$0xff]
        %v485 = vld [vmem:[#allocation2 + $0x4a0] sm:$0xff]
        %v486 = vld [vmem:[#allocation2 + $0x4a8] sm:$0xff]
        %v487 = vld [vmem:[#allocation2 + $0x4b0] sm:$0xff]
        %v488 = vld [vmem:[#allocation2 + $0x4b8] sm:$0xff]
        %v489 = vld [vmem:[#allocation2 + $0x4c0] sm:$0xff]
        %v490 = vld [vmem:[#allocation2 + $0x4c8] sm:$0xff]
        %v491 = vld [vmem:[#allocation2 + $0x4d0] sm:$0xff]
        %v492 = vld [vmem:[#allocation2 + $0x4d8] sm:$0xff]
        %v493 = vld [vmem:[#allocation2 + $0x4e0] sm:$0xff]
        %v494 = vld [vmem:[#allocation2 + $0x4e8] sm:$0xff]
        %v495 = vld [vmem:[#allocation2 + $0x4f0] sm:$0xff]
        %v496 = vld [vmem:[#allocation2 + $0x4f8] sm:$0xff]
        %v497 = vld [vmem:[#allocation2 + $0x500] sm:$0xff]
        %v498 = vld [vmem:[#allocation2 + $0x508] sm:$0xff]
        %v499 = vld [vmem:[#allocation2 + $0x510] sm:$0xff]
        %v500 = vld [vmem:[#allocation2 + $0x518] sm:$0xff]
        %v501 = vld [vmem:[#allocation2 + $0x520] sm:$0xff]
        %v502 = vld [vmem:[#allocation2 + $0x528] sm:$0xff]
        %v503 = vld [vmem:[#allocation2 + $0x530] sm:$0xff]
        %v504 = vld [vmem:[#allocation2 + $0x538] sm:$0xff]
        %v505 = vld [vmem:[#allocation2 + $0x540] sm:$0xff]
        %v506 = vld [vmem:[#allocation2 + $0x548] sm:$0xff]
        %v507 = vld [vmem:[#allocation2 + $0x550] sm:$0xff]
        %v508 = vld [vmem:[#allocation2 + $0x558] sm:$0xff]
        %v509 = vld [vmem:[#allocation2 + $0x560] sm:$0xff]
        %v510 = vld [vmem:[#allocation2 + $0x568] sm:$0xff]
        %v511 = vld [vmem:[#allocation2 + $0x570] sm:$0xff]
        %v512 = vld [vmem:[#allocation2 + $0x578] sm:$0xff]
        %v513 = vld [vmem:[#allocation2 + $0x580] sm:$0xff]
        %v514 = vld [vmem:[#allocation2 + $0x588] sm:$0xff]
        %v515 = vld [vmem:[#allocation2 + $0x590] sm:$0xff]
        %v516 = vld [vmem:[#allocation2 + $0x598] sm:$0xff]
        %v517 = vld [vmem:[#allocation2 + $0x5a0] sm:$0xff]
        %v518 = vld [vmem:[#allocation2 + $0x5a8] sm:$0xff]
        %v519 = vld [vmem:[#allocation2 + $0x5b0] sm:$0xff]
        %v520 = vld [vmem:[#allocation2 + $0x5b8] sm:$0xff]
        %v521 = vld [vmem:[#allocation2 + $0x5c0] sm:$0xff]
        %v522 = vld [vmem:[#allocation2 + $0x5c8] sm:$0xff]
        %v523 = vld [vmem:[#allocation2 + $0x5d0] sm:$0xff]
        %v524 = vld [vmem:[#allocation2 + $0x5d8] sm:$0xff]
        %v525 = vld [vmem:[#allocation2 + $0x5e0] sm:$0xff]
        %v526 = vld [vmem:[#allocation2 + $0x5e8] sm:$0xff]
        %v527 = vld [vmem:[#allocation2 + $0x5f0] sm:$0xff]
        %v528 = vld [vmem:[#allocation2 + $0x5f8] sm:$0xff]
        %v529 = vld [vmem:[#allocation2 + $0x600] sm:$0xff]
        %v530 = vld [vmem:[#allocation2 + $0x608] sm:$0xff]
        %v531 = vld [vmem:[#allocation2 + $0x610] sm:$0xff]
        %v532 = vld [vmem:[#allocation2 + $0x618] sm:$0xff]
        %v533 = vld [vmem:[%s2] sm:$0xf]
        %v535 = vlaneseq
        %v536 = vshrl.u32 %v535, 7
        %v537 = vsub.s32 0, %v536
        %v538 = vrot.slane %v533, %v537
        %v539 = vlaneseq
        %v540 = vshrl.u32 %v539, 7
        %v541 = vsub.s32 1, %v540
        %v542 = vrot.slane %v533, %v541
        %v543 = vlaneseq
        %v544 = vshrl.u32 %v543, 7
        %v545 = vsub.s32 2, %v544
        %v546 = vrot.slane %v533, %v545
        %v547 = vlaneseq
        %v548 = vshrl.u32 %v547, 7
        %v549 = vsub.s32 3, %v548
        %v550 = vrot.slane %v533, %v549
        %v751 = vunpack.c.l.b16 %v337
        %v752 = vunpack.c.h.b16 %v337
        %v753 = vunpack.c.l.b16 %v338
        %v754 = vunpack.c.h.b16 %v338
        %v755 = vunpack.c.l.b16 %v339
        %v756 = vunpack.c.h.b16 %v339
        %v757 = vunpack.c.l.b16 %v340
        %v758 = vunpack.c.h.b16 %v340
        %v759 = vunpack.c.l.b16 %v341
        %v760 = vunpack.c.h.b16 %v341
        %v761 = vunpack.c.l.b16 %v342
        %v762 = vunpack.c.h.b16 %v342
        %v763 = vunpack.c.l.b16 %v343
        %v764 = vunpack.c.h.b16 %v343
        %v765 = vunpack.c.l.b16 %v344
        %v766 = vunpack.c.h.b16 %v344
        %v767 = vunpack.c.l.b16 %v345
        %v768 = vunpack.c.h.b16 %v345
        %v769 = vunpack.c.l.b16 %v346
        %v770 = vunpack.c.h.b16 %v346
        %v771 = vunpack.c.l.b16 %v347
        %v772 = vunpack.c.h.b16 %v347
        %v773 = vunpack.c.l.b16 %v348
        %v774 = vunpack.c.h.b16 %v348
        %v775 = vunpack.c.l.b16 %v349
        %v776 = vunpack.c.h.b16 %v349
        %v777 = vunpack.c.l.b16 %v350
        %v778 = vunpack.c.h.b16 %v350
        %v779 = vunpack.c.l.b16 %v351
        %v780 = vunpack.c.h.b16 %v351
        %v781 = vunpack.c.l.b16 %v352
        %v782 = vunpack.c.h.b16 %v352
        %v783 = vunpack.c.l.b16 %v353
        %v784 = vunpack.c.h.b16 %v353
        %v785 = vunpack.c.l.b16 %v354
        %v786 = vunpack.c.h.b16 %v354
        %v787 = vunpack.c.l.b16 %v355
        %v788 = vunpack.c.h.b16 %v355
        %v789 = vunpack.c.l.b16 %v356
        %v790 = vunpack.c.h.b16 %v356
        %v791 = vunpack.c.l.b16 %v357
        %v792 = vunpack.c.h.b16 %v357
        %v793 = vunpack.c.l.b16 %v358
        %v794 = vunpack.c.h.b16 %v358
        %v795 = vunpack.c.l.b16 %v359
        %v796 = vunpack.c.h.b16 %v359
        %v797 = vunpack.c.l.b16 %v360
        %v798 = vunpack.c.h.b16 %v360
        %v799 = vunpack.c.l.b16 %v361
        %v800 = vunpack.c.h.b16 %v361
        %v801 = vunpack.c.l.b16 %v362
        %v802 = vunpack.c.h.b16 %v362
        %v803 = vunpack.c.l.b16 %v363
        %v804 = vunpack.c.h.b16 %v363
        %v805 = vunpack.c.l.b16 %v364
        %v806 = vunpack.c.h.b16 %v364
        %v807 = vunpack.c.l.b16 %v365
        %v808 = vunpack.c.h.b16 %v365
        %v809 = vunpack.c.l.b16 %v366
        %v810 = vunpack.c.h.b16 %v366
        %v811 = vunpack.c.l.b16 %v367
        %v812 = vunpack.c.h.b16 %v367
        %v813 = vunpack.c.l.b16 %v368
        %v814 = vunpack.c.h.b16 %v368
        %v815 = vunpack.c.l.b16 %v369
        %v816 = vunpack.c.h.b16 %v369
        %v817 = vunpack.c.l.b16 %v370
        %v818 = vunpack.c.h.b16 %v370
        %v819 = vunpack.c.l.b16 %v371
        %v820 = vunpack.c.h.b16 %v371
        %v821 = vunpack.c.l.b16 %v372
        %v822 = vunpack.c.h.b16 %v372
        %v823 = vunpack.c.l.b16 %v373
        %v824 = vunpack.c.h.b16 %v373
        %v825 = vunpack.c.l.b16 %v374
        %v826 = vunpack.c.h.b16 %v374
        %v827 = vunpack.c.l.b16 %v375
        %v828 = vunpack.c.h.b16 %v375
        %v829 = vunpack.c.l.b16 %v376
        %v830 = vunpack.c.h.b16 %v376
        %v831 = vunpack.c.l.b16 %v377
        %v832 = vunpack.c.h.b16 %v377
        %v833 = vunpack.c.l.b16 %v378
        %v834 = vunpack.c.h.b16 %v378
        %v835 = vunpack.c.l.b16 %v379
        %v836 = vunpack.c.h.b16 %v379
        %v837 = vunpack.c.l.b16 %v380
        %v838 = vunpack.c.h.b16 %v380
        %v839 = vunpack.c.l.b16 %v381
        %v840 = vunpack.c.h.b16 %v381
        %v841 = vunpack.c.l.b16 %v382
        %v842 = vunpack.c.h.b16 %v382
        %v843 = vunpack.c.l.b16 %v383
        %v844 = vunpack.c.h.b16 %v383
        %v845 = vunpack.c.l.b16 %v384
        %v846 = vunpack.c.h.b16 %v384
        %v847 = vunpack.c.l.b16 %v385
        %v848 = vunpack.c.h.b16 %v385
        %v849 = vunpack.c.l.b16 %v386
        %v850 = vunpack.c.h.b16 %v386
        %v851 = vunpack.c.l.b16 %v387
        %v852 = vunpack.c.h.b16 %v387
        %v853 = vunpack.c.l.b16 %v388
        %v854 = vunpack.c.h.b16 %v388
        %v855 = vunpack.c.l.b16 %v389
        %v856 = vunpack.c.h.b16 %v389
        %v857 = vunpack.c.l.b16 %v390
        %v858 = vunpack.c.h.b16 %v390
        %v859 = vunpack.c.l.b16 %v391
        %v860 = vunpack.c.h.b16 %v391
        %v861 = vunpack.c.l.b16 %v392
        %v862 = vunpack.c.h.b16 %v392
        %v863 = vunpack.c.l.b16 %v393
        %v864 = vunpack.c.h.b16 %v393
        %v865 = vunpack.c.l.b16 %v394
        %v866 = vunpack.c.h.b16 %v394
        %v867 = vunpack.c.l.b16 %v395
        %v868 = vunpack.c.h.b16 %v395
        %v869 = vunpack.c.l.b16 %v396
        %v870 = vunpack.c.h.b16 %v396
        %v871 = vunpack.c.l.b16 %v397
        %v872 = vunpack.c.h.b16 %v397
        %v873 = vunpack.c.l.b16 %v398
        %v874 = vunpack.c.h.b16 %v398
        %v875 = vunpack.c.l.b16 %v399
        %v876 = vunpack.c.h.b16 %v399
        %v877 = vunpack.c.l.b16 %v400
        %v878 = vunpack.c.h.b16 %v400
        %v879 = vunpack.c.l.b16 %v401
        %v880 = vunpack.c.h.b16 %v401
        %v881 = vunpack.c.l.b16 %v402
        %v882 = vunpack.c.h.b16 %v402
        %v883 = vunpack.c.l.b16 %v403
        %v884 = vunpack.c.h.b16 %v403
        %v885 = vunpack.c.l.b16 %v404
        %v886 = vunpack.c.h.b16 %v404
        %v887 = vunpack.c.l.b16 %v405
        %v888 = vunpack.c.h.b16 %v405
        %v889 = vunpack.c.l.b16 %v406
        %v890 = vunpack.c.h.b16 %v406
        %v891 = vunpack.c.l.b16 %v407
        %v892 = vunpack.c.h.b16 %v407
        %v893 = vunpack.c.l.b16 %v408
        %v894 = vunpack.c.h.b16 %v408
        %v895 = vunpack.c.l.b16 %v409
        %v896 = vunpack.c.h.b16 %v409
        %v897 = vunpack.c.l.b16 %v410
        %v898 = vunpack.c.h.b16 %v410
        %v899 = vunpack.c.l.b16 %v411
        %v900 = vunpack.c.h.b16 %v411
        %v901 = vunpack.c.l.b16 %v412
        %v902 = vunpack.c.h.b16 %v412
        %v903 = vunpack.c.l.b16 %v413
        %v904 = vunpack.c.h.b16 %v413
        %v905 = vunpack.c.l.b16 %v414
        %v906 = vunpack.c.h.b16 %v414
        %v907 = vunpack.c.l.b16 %v415
        %v908 = vunpack.c.h.b16 %v415
        %v909 = vunpack.c.l.b16 %v416
        %v910 = vunpack.c.h.b16 %v416
        %v911 = vunpack.c.l.b16 %v417
        %v912 = vunpack.c.h.b16 %v417
        %v913 = vunpack.c.l.b16 %v418
        %v914 = vunpack.c.h.b16 %v418
        %v915 = vunpack.c.l.b16 %v419
        %v916 = vunpack.c.h.b16 %v419
        %v917 = vunpack.c.l.b16 %v420
        %v918 = vunpack.c.h.b16 %v420
        %v919 = vunpack.c.l.b16 %v421
        %v920 = vunpack.c.h.b16 %v421
        %v921 = vunpack.c.l.b16 %v422
        %v922 = vunpack.c.h.b16 %v422
        %v923 = vunpack.c.l.b16 %v423
        %v924 = vunpack.c.h.b16 %v423
        %v925 = vunpack.c.l.b16 %v424
        %v926 = vunpack.c.h.b16 %v424
        %v927 = vunpack.c.l.b16 %v425
        %v928 = vunpack.c.h.b16 %v425
        %v929 = vunpack.c.l.b16 %v426
        %v930 = vunpack.c.h.b16 %v426
        %v931 = vunpack.c.l.b16 %v427
        %v932 = vunpack.c.h.b16 %v427
        %v933 = vunpack.c.l.b16 %v428
        %v934 = vunpack.c.h.b16 %v428
        %v935 = vunpack.c.l.b16 %v429
        %v936 = vunpack.c.h.b16 %v429
        %v937 = vunpack.c.l.b16 %v430
        %v938 = vunpack.c.h.b16 %v430
        %v939 = vunpack.c.l.b16 %v431
        %v940 = vunpack.c.h.b16 %v431
        %v941 = vunpack.c.l.b16 %v432
        %v942 = vunpack.c.h.b16 %v432
        %v943 = vunpack.c.l.b16 %v433
        %v944 = vunpack.c.h.b16 %v433
        %v945 = vunpack.c.l.b16 %v434
        %v946 = vunpack.c.h.b16 %v434
        %v947 = vunpack.c.l.b16 %v435
        %v948 = vunpack.c.h.b16 %v435
        %v949 = vunpack.c.l.b16 %v436
        %v950 = vunpack.c.h.b16 %v436
        %v951 = vunpack.c.l.b16 %v437
        %v952 = vunpack.c.h.b16 %v437
        %v953 = vunpack.c.l.b16 %v438
        %v954 = vunpack.c.h.b16 %v438
        %v955 = vunpack.c.l.b16 %v439
        %v956 = vunpack.c.h.b16 %v439
        %v957 = vunpack.c.l.b16 %v440
        %v958 = vunpack.c.h.b16 %v440
        %v959 = vunpack.c.l.b16 %v441
        %v960 = vunpack.c.h.b16 %v441
        %v961 = vunpack.c.l.b16 %v442
        %v962 = vunpack.c.h.b16 %v442
        %v963 = vunpack.c.l.b16 %v443
        %v964 = vunpack.c.h.b16 %v443
        %v965 = vunpack.c.l.b16 %v444
        %v966 = vunpack.c.h.b16 %v444
        %v967 = vunpack.c.l.b16 %v445
        %v968 = vunpack.c.h.b16 %v445
        %v969 = vunpack.c.l.b16 %v446
        %v970 = vunpack.c.h.b16 %v446
        %v971 = vunpack.c.l.b16 %v447
        %v972 = vunpack.c.h.b16 %v447
        %v973 = vunpack.c.l.b16 %v448
        %v974 = vunpack.c.h.b16 %v448
        %v975 = vunpack.c.l.b16 %v449
        %v976 = vunpack.c.h.b16 %v449
        %v977 = vunpack.c.l.b16 %v450
        %v978 = vunpack.c.h.b16 %v450
        %v979 = vunpack.c.l.b16 %v451
        %v980 = vunpack.c.h.b16 %v451
        %v981 = vunpack.c.l.b16 %v452
        %v982 = vunpack.c.h.b16 %v452
        %v983 = vunpack.c.l.b16 %v453
        %v984 = vunpack.c.h.b16 %v453
        %v985 = vunpack.c.l.b16 %v454
        %v986 = vunpack.c.h.b16 %v454
        %v987 = vunpack.c.l.b16 %v455
        %v988 = vunpack.c.h.b16 %v455
        %v989 = vunpack.c.l.b16 %v456
        %v990 = vunpack.c.h.b16 %v456
        %v991 = vunpack.c.l.b16 %v457
        %v992 = vunpack.c.h.b16 %v457
        %v993 = vunpack.c.l.b16 %v458
        %v994 = vunpack.c.h.b16 %v458
        %v995 = vunpack.c.l.b16 %v459
        %v996 = vunpack.c.h.b16 %v459
        %v997 = vunpack.c.l.b16 %v460
        %v998 = vunpack.c.h.b16 %v460
        %v999 = vunpack.c.l.b16 %v461
        %v1000 = vunpack.c.h.b16 %v461
        %v1001 = vunpack.c.l.b16 %v462
        %v1002 = vunpack.c.h.b16 %v462
        %v1003 = vunpack.c.l.b16 %v463
        %v1004 = vunpack.c.h.b16 %v463
        %v1005 = vunpack.c.l.b16 %v464
        %v1006 = vunpack.c.h.b16 %v464
        %v1007 = vunpack.c.l.b16 %v465
        %v1008 = vunpack.c.h.b16 %v465
        %v1009 = vunpack.c.l.b16 %v466
        %v1010 = vunpack.c.h.b16 %v466
        %v1011 = vunpack.c.l.b16 %v467
        %v1012 = vunpack.c.h.b16 %v467
        %v1013 = vunpack.c.l.b16 %v468
        %v1014 = vunpack.c.h.b16 %v468
        %v1015 = vunpack.c.l.b16 %v469
        %v1016 = vunpack.c.h.b16 %v469
        %v1017 = vunpack.c.l.b16 %v470
        %v1018 = vunpack.c.h.b16 %v470
        %v1019 = vunpack.c.l.b16 %v471
        %v1020 = vunpack.c.h.b16 %v471
        %v1021 = vunpack.c.l.b16 %v472
        %v1022 = vunpack.c.h.b16 %v472
        %v1023 = vunpack.c.l.b16 %v473
        %v1024 = vunpack.c.h.b16 %v473
        %v1025 = vunpack.c.l.b16 %v474
        %v1026 = vunpack.c.h.b16 %v474
        %v1027 = vunpack.c.l.b16 %v475
        %v1028 = vunpack.c.h.b16 %v475
        %v1029 = vunpack.c.l.b16 %v476
        %v1030 = vunpack.c.h.b16 %v476
        %v1031 = vunpack.c.l.b16 %v477
        %v1032 = vunpack.c.h.b16 %v477
        %v1033 = vunpack.c.l.b16 %v478
        %v1034 = vunpack.c.h.b16 %v478
        %v1035 = vunpack.c.l.b16 %v479
        %v1036 = vunpack.c.h.b16 %v479
        %v1037 = vunpack.c.l.b16 %v480
        %v1038 = vunpack.c.h.b16 %v480
        %v1039 = vunpack.c.l.b16 %v481
        %v1040 = vunpack.c.h.b16 %v481
        %v1041 = vunpack.c.l.b16 %v482
        %v1042 = vunpack.c.h.b16 %v482
        %v1043 = vunpack.c.l.b16 %v483
        %v1044 = vunpack.c.h.b16 %v483
        %v1045 = vunpack.c.l.b16 %v484
        %v1046 = vunpack.c.h.b16 %v484
        %v1047 = vunpack.c.l.b16 %v485
        %v1048 = vunpack.c.h.b16 %v485
        %v1049 = vunpack.c.l.b16 %v486
        %v1050 = vunpack.c.h.b16 %v486
        %v1051 = vunpack.c.l.b16 %v487
        %v1052 = vunpack.c.h.b16 %v487
        %v1053 = vunpack.c.l.b16 %v488
        %v1054 = vunpack.c.h.b16 %v488
        %v1055 = vunpack.c.l.b16 %v489
        %v1056 = vunpack.c.h.b16 %v489
        %v1057 = vunpack.c.l.b16 %v490
        %v1058 = vunpack.c.h.b16 %v490
        %v1059 = vunpack.c.l.b16 %v491
        %v1060 = vunpack.c.h.b16 %v491
        %v1061 = vunpack.c.l.b16 %v492
        %v1062 = vunpack.c.h.b16 %v492
        %v1063 = vunpack.c.l.b16 %v493
        %v1064 = vunpack.c.h.b16 %v493
        %v1065 = vunpack.c.l.b16 %v494
        %v1066 = vunpack.c.h.b16 %v494
        %v1067 = vunpack.c.l.b16 %v495
        %v1068 = vunpack.c.h.b16 %v495
        %v1069 = vunpack.c.l.b16 %v496
        %v1070 = vunpack.c.h.b16 %v496
        %v1071 = vunpack.c.l.b16 %v497
        %v1072 = vunpack.c.h.b16 %v497
        %v1073 = vunpack.c.l.b16 %v498
        %v1074 = vunpack.c.h.b16 %v498
        %v1075 = vunpack.c.l.b16 %v499
        %v1076 = vunpack.c.h.b16 %v499
        %v1077 = vunpack.c.l.b16 %v500
        %v1078 = vunpack.c.h.b16 %v500
        %v1079 = vunpack.c.l.b16 %v501
        %v1080 = vunpack.c.h.b16 %v501
        %v1081 = vunpack.c.l.b16 %v502
        %v1082 = vunpack.c.h.b16 %v502
        %v1083 = vunpack.c.l.b16 %v503
        %v1084 = vunpack.c.h.b16 %v503
        %v1085 = vunpack.c.l.b16 %v504
        %v1086 = vunpack.c.h.b16 %v504
        %v1087 = vunpack.c.l.b16 %v505
        %v1088 = vunpack.c.h.b16 %v505
        %v1089 = vunpack.c.l.b16 %v506
        %v1090 = vunpack.c.h.b16 %v506
        %v1091 = vunpack.c.l.b16 %v507
        %v1092 = vunpack.c.h.b16 %v507
        %v1093 = vunpack.c.l.b16 %v508
        %v1094 = vunpack.c.h.b16 %v508
        %v1095 = vunpack.c.l.b16 %v509
        %v1096 = vunpack.c.h.b16 %v509
        %v1097 = vunpack.c.l.b16 %v510
        %v1098 = vunpack.c.h.b16 %v510
        %v1099 = vunpack.c.l.b16 %v511
        %v1100 = vunpack.c.h.b16 %v511
        %v1101 = vunpack.c.l.b16 %v512
        %v1102 = vunpack.c.h.b16 %v512
        %v1103 = vunpack.c.l.b16 %v513
        %v1104 = vunpack.c.h.b16 %v513
        %v1105 = vunpack.c.l.b16 %v514
        %v1106 = vunpack.c.h.b16 %v514
        %v1107 = vunpack.c.l.b16 %v515
        %v1108 = vunpack.c.h.b16 %v515
        %v1109 = vunpack.c.l.b16 %v516
        %v1110 = vunpack.c.h.b16 %v516
        %v1111 = vunpack.c.l.b16 %v517
        %v1112 = vunpack.c.h.b16 %v517
        %v1113 = vunpack.c.l.b16 %v518
        %v1114 = vunpack.c.h.b16 %v518
        %v1115 = vunpack.c.l.b16 %v519
        %v1116 = vunpack.c.h.b16 %v519
        %v1117 = vunpack.c.l.b16 %v520
        %v1118 = vunpack.c.h.b16 %v520
        %v1119 = vunpack.c.l.b16 %v521
        %v1120 = vunpack.c.h.b16 %v521
        %v1121 = vunpack.c.l.b16 %v522
        %v1122 = vunpack.c.h.b16 %v522
        %v1123 = vunpack.c.l.b16 %v523
        %v1124 = vunpack.c.h.b16 %v523
        %v1125 = vunpack.c.l.b16 %v524
        %v1126 = vunpack.c.h.b16 %v524
        %v1127 = vunpack.c.l.b16 %v525
        %v1128 = vunpack.c.h.b16 %v525
        %v1129 = vunpack.c.l.b16 %v526
        %v1130 = vunpack.c.h.b16 %v526
        %v1131 = vunpack.c.l.b16 %v527
        %v1132 = vunpack.c.h.b16 %v527
        %v1133 = vunpack.c.l.b16 %v528
        %v1134 = vunpack.c.h.b16 %v528
        %v1135 = vunpack.c.l.b16 %v529
        %v1136 = vunpack.c.h.b16 %v529
        %v1137 = vunpack.c.l.b16 %v530
        %v1138 = vunpack.c.h.b16 %v530
        %v1139 = vunpack.c.l.b16 %v531
        %v1140 = vunpack.c.h.b16 %v531
        %v1141 = vunpack.c.l.b16 %v532
        %v1142 = vunpack.c.h.b16 %v532
        %v1143 = vpack.c.b16 %v755, %v751
        %v1144 = vpack.c.b16 %v756, %v752
        %v1145 = vpack.c.b16 %v757, %v753
        %v1146 = vpack.c.b16 %v758, %v754
        %v1147 = vpack.c.b16 %v763, %v759
        %v1148 = vpack.c.b16 %v764, %v760
        %v1149 = vpack.c.b16 %v765, %v761
        %v1150 = vpack.c.b16 %v766, %v762
        %v1151 = vpack.c.b16 %v771, %v767
        %v1152 = vpack.c.b16 %v772, %v768
        %v1153 = vpack.c.b16 %v773, %v769
        %v1154 = vpack.c.b16 %v774, %v770
        %v1155 = vpack.c.b16 %v779, %v775
        %v1156 = vpack.c.b16 %v780, %v776
        %v1157 = vpack.c.b16 %v781, %v777
        %v1158 = vpack.c.b16 %v782, %v778
        %v1159 = vpack.c.b16 %v787, %v783
        %v1160 = vpack.c.b16 %v788, %v784
        %v1161 = vpack.c.b16 %v789, %v785
        %v1162 = vpack.c.b16 %v790, %v786
        %v1163 = vpack.c.b16 %v795, %v791
        %v1164 = vpack.c.b16 %v796, %v792
        %v1165 = vpack.c.b16 %v797, %v793
        %v1166 = vpack.c.b16 %v798, %v794
        %v1167 = vpack.c.b16 %v803, %v799
        %v1168 = vpack.c.b16 %v804, %v800
        %v1169 = vpack.c.b16 %v805, %v801
        %v1170 = vpack.c.b16 %v806, %v802
        %v1171 = vpack.c.b16 %v811, %v807
        %v1172 = vpack.c.b16 %v812, %v808
        %v1173 = vpack.c.b16 %v813, %v809
        %v1174 = vpack.c.b16 %v814, %v810
        %v1175 = vpack.c.b16 %v819, %v815
        %v1176 = vpack.c.b16 %v820, %v816
        %v1177 = vpack.c.b16 %v821, %v817
        %v1178 = vpack.c.b16 %v822, %v818
        %v1179 = vpack.c.b16 %v827, %v823
        %v1180 = vpack.c.b16 %v828, %v824
        %v1181 = vpack.c.b16 %v829, %v825
        %v1182 = vpack.c.b16 %v830, %v826
        %v1183 = vpack.c.b16 %v835, %v831
        %v1184 = vpack.c.b16 %v836, %v832
        %v1185 = vpack.c.b16 %v837, %v833
        %v1186 = vpack.c.b16 %v838, %v834
        %v1187 = vpack.c.b16 %v843, %v839
        %v1188 = vpack.c.b16 %v844, %v840
        %v1189 = vpack.c.b16 %v845, %v841
        %v1190 = vpack.c.b16 %v846, %v842
        %v1191 = vpack.c.b16 %v851, %v847
        %v1192 = vpack.c.b16 %v852, %v848
        %v1193 = vpack.c.b16 %v853, %v849
        %v1194 = vpack.c.b16 %v854, %v850
        %v1195 = vpack.c.b16 %v859, %v855
        %v1196 = vpack.c.b16 %v860, %v856
        %v1197 = vpack.c.b16 %v861, %v857
        %v1198 = vpack.c.b16 %v862, %v858
        %v1199 = vpack.c.b16 %v867, %v863
        %v1200 = vpack.c.b16 %v868, %v864
        %v1201 = vpack.c.b16 %v869, %v865
        %v1202 = vpack.c.b16 %v870, %v866
        %v1203 = vpack.c.b16 %v875, %v871
        %v1204 = vpack.c.b16 %v876, %v872
        %v1205 = vpack.c.b16 %v877, %v873
        %v1206 = vpack.c.b16 %v878, %v874
        %v1207 = vpack.c.b16 %v883, %v879
        %v1208 = vpack.c.b16 %v884, %v880
        %v1209 = vpack.c.b16 %v885, %v881
        %v1210 = vpack.c.b16 %v886, %v882
        %v1211 = vpack.c.b16 %v891, %v887
        %v1212 = vpack.c.b16 %v892, %v888
        %v1213 = vpack.c.b16 %v893, %v889
        %v1214 = vpack.c.b16 %v894, %v890
        %v1215 = vpack.c.b16 %v899, %v895
        %v1216 = vpack.c.b16 %v900, %v896
        %v1217 = vpack.c.b16 %v901, %v897
        %v1218 = vpack.c.b16 %v902, %v898
        %v1219 = vpack.c.b16 %v907, %v903
        %v1220 = vpack.c.b16 %v908, %v904
        %v1221 = vpack.c.b16 %v909, %v905
        %v1222 = vpack.c.b16 %v910, %v906
        %v1223 = vpack.c.b16 %v915, %v911
        %v1224 = vpack.c.b16 %v916, %v912
        %v1225 = vpack.c.b16 %v917, %v913
        %v1226 = vpack.c.b16 %v918, %v914
        %v1227 = vpack.c.b16 %v923, %v919
        %v1228 = vpack.c.b16 %v924, %v920
        %v1229 = vpack.c.b16 %v925, %v921
        %v1230 = vpack.c.b16 %v926, %v922
        %v1231 = vpack.c.b16 %v931, %v927
        %v1232 = vpack.c.b16 %v932, %v928
        %v1233 = vpack.c.b16 %v933, %v929
        %v1234 = vpack.c.b16 %v934, %v930
        %v1235 = vpack.c.b16 %v939, %v935
        %v1236 = vpack.c.b16 %v940, %v936
        %v1237 = vpack.c.b16 %v941, %v937
        %v1238 = vpack.c.b16 %v942, %v938
        %v1239 = vpack.c.b16 %v947, %v943
        %v1240 = vpack.c.b16 %v948, %v944
        %v1241 = vpack.c.b16 %v949, %v945
        %v1242 = vpack.c.b16 %v950, %v946
        %v1243 = vpack.c.b16 %v955, %v951
        %v1244 = vpack.c.b16 %v956, %v952
        %v1245 = vpack.c.b16 %v957, %v953
        %v1246 = vpack.c.b16 %v958, %v954
        %v1247 = vpack.c.b16 %v963, %v959
        %v1248 = vpack.c.b16 %v964, %v960
        %v1249 = vpack.c.b16 %v965, %v961
        %v1250 = vpack.c.b16 %v966, %v962
        %v1251 = vpack.c.b16 %v971, %v967
        %v1252 = vpack.c.b16 %v972, %v968
        %v1253 = vpack.c.b16 %v973, %v969
        %v1254 = vpack.c.b16 %v974, %v970
        %v1255 = vpack.c.b16 %v979, %v975
        %v1256 = vpack.c.b16 %v980, %v976
        %v1257 = vpack.c.b16 %v981, %v977
        %v1258 = vpack.c.b16 %v982, %v978
        %v1259 = vpack.c.b16 %v987, %v983
        %v1260 = vpack.c.b16 %v988, %v984
        %v1261 = vpack.c.b16 %v989, %v985
        %v1262 = vpack.c.b16 %v990, %v986
        %v1263 = vpack.c.b16 %v995, %v991
        %v1264 = vpack.c.b16 %v996, %v992
        %v1265 = vpack.c.b16 %v997, %v993
        %v1266 = vpack.c.b16 %v998, %v994
        %v1267 = vpack.c.b16 %v1003, %v999
        %v1268 = vpack.c.b16 %v1004, %v1000
        %v1269 = vpack.c.b16 %v1005, %v1001
        %v1270 = vpack.c.b16 %v1006, %v1002
        %v1271 = vpack.c.b16 %v1011, %v1007
        %v1272 = vpack.c.b16 %v1012, %v1008
        %v1273 = vpack.c.b16 %v1013, %v1009
        %v1274 = vpack.c.b16 %v1014, %v1010
        %v1275 = vpack.c.b16 %v1019, %v1015
        %v1276 = vpack.c.b16 %v1020, %v1016
        %v1277 = vpack.c.b16 %v1021, %v1017
        %v1278 = vpack.c.b16 %v1022, %v1018
        %v1279 = vpack.c.b16 %v1027, %v1023
        %v1280 = vpack.c.b16 %v1028, %v1024
        %v1281 = vpack.c.b16 %v1029, %v1025
        %v1282 = vpack.c.b16 %v1030, %v1026
        %v1283 = vpack.c.b16 %v1035, %v1031
        %v1284 = vpack.c.b16 %v1036, %v1032
        %v1285 = vpack.c.b16 %v1037, %v1033
        %v1286 = vpack.c.b16 %v1038, %v1034
        %v1287 = vpack.c.b16 %v1043, %v1039
        %v1288 = vpack.c.b16 %v1044, %v1040
        %v1289 = vpack.c.b16 %v1045, %v1041
        %v1290 = vpack.c.b16 %v1046, %v1042
        %v1291 = vpack.c.b16 %v1051, %v1047
        %v1292 = vpack.c.b16 %v1052, %v1048
        %v1293 = vpack.c.b16 %v1053, %v1049
        %v1294 = vpack.c.b16 %v1054, %v1050
        %v1295 = vpack.c.b16 %v1059, %v1055
        %v1296 = vpack.c.b16 %v1060, %v1056
        %v1297 = vpack.c.b16 %v1061, %v1057
        %v1298 = vpack.c.b16 %v1062, %v1058
        %v1299 = vpack.c.b16 %v1067, %v1063
        %v1300 = vpack.c.b16 %v1068, %v1064
        %v1301 = vpack.c.b16 %v1069, %v1065
        %v1302 = vpack.c.b16 %v1070, %v1066
        %v1303 = vpack.c.b16 %v1075, %v1071
        %v1304 = vpack.c.b16 %v1076, %v1072
        %v1305 = vpack.c.b16 %v1077, %v1073
        %v1306 = vpack.c.b16 %v1078, %v1074
        %v1307 = vpack.c.b16 %v1083, %v1079
        %v1308 = vpack.c.b16 %v1084, %v1080
        %v1309 = vpack.c.b16 %v1085, %v1081
        %v1310 = vpack.c.b16 %v1086, %v1082
        %v1311 = vpack.c.b16 %v1091, %v1087
        %v1312 = vpack.c.b16 %v1092, %v1088
        %v1313 = vpack.c.b16 %v1093, %v1089
        %v1314 = vpack.c.b16 %v1094, %v1090
        %v1315 = vpack.c.b16 %v1099, %v1095
        %v1316 = vpack.c.b16 %v1100, %v1096
        %v1317 = vpack.c.b16 %v1101, %v1097
        %v1318 = vpack.c.b16 %v1102, %v1098
        %v1319 = vpack.c.b16 %v1107, %v1103
        %v1320 = vpack.c.b16 %v1108, %v1104
        %v1321 = vpack.c.b16 %v1109, %v1105
        %v1322 = vpack.c.b16 %v1110, %v1106
        %v1323 = vpack.c.b16 %v1115, %v1111
        %v1324 = vpack.c.b16 %v1116, %v1112
        %v1325 = vpack.c.b16 %v1117, %v1113
        %v1326 = vpack.c.b16 %v1118, %v1114
        %v1327 = vpack.c.b16 %v1123, %v1119
        %v1328 = vpack.c.b16 %v1124, %v1120
        %v1329 = vpack.c.b16 %v1125, %v1121
        %v1330 = vpack.c.b16 %v1126, %v1122
        %v1331 = vpack.c.b16 %v1131, %v1127
        %v1332 = vpack.c.b16 %v1132, %v1128
        %v1333 = vpack.c.b16 %v1133, %v1129
        %v1334 = vpack.c.b16 %v1134, %v1130
        %v1335 = vpack.c.b16 %v1139, %v1135
        %v1336 = vpack.c.b16 %v1140, %v1136
        %v1337 = vpack.c.b16 %v1141, %v1137
        %v1338 = vpack.c.b16 %v1142, %v1138
        %vm1535 = vcmask 130048
        %v1537 = vsel %vm1535, %v336, 0
        %1539 = vmatprep.subr.bf16.mxu0 %v1172
        %1540 = vmatpush1.bf16.msra.mxu0 %v1171
        %1541 = vmatprep.subr.bf16.mxu0 %v1168
        %1542 = vmatpush1.bf16.msra.mxu0 %v1167
        %1543 = vmatprep.subr.bf16.mxu0 %v1164
        %1544 = vmatpush1.bf16.msra.mxu0 %v1163
        %1545 = vmatprep.subr.bf16.mxu0 %v1160
        %1546 = vmatpush1.bf16.msra.mxu0 %v1159
        %1547 = vmatprep.subr.bf16.mxu0 %v1156
        %1548 = vmatpush1.bf16.msra.mxu0 %v1155
        %1549 = vmatprep.subr.bf16.mxu0 %v1152
        %1550 = vmatpush1.bf16.msra.mxu0 %v1151
        %1551 = vmatprep.subr.bf16.mxu0 %v1148
        %1552 = vmatpush1.bf16.msra.mxu0 %v1147
        %1553 = vmatprep.subr.bf16.mxu0 %v1144
        %1554 = vmatpush1.bf16.msra.mxu0 %v1143
        %1555 = vmatprep.subr.bf16.mxu0 %v1204
        %1556 = vmatpush2.bf16.msra.mxu0 %v1203
        %1557 = vmatprep.subr.bf16.mxu0 %v1200
        %1558 = vmatpush2.bf16.msra.mxu0 %v1199
        %1559 = vmatprep.subr.bf16.mxu0 %v1196
        %1560 = vmatpush2.bf16.msra.mxu0 %v1195
        %1561 = vmatprep.subr.bf16.mxu0 %v1192
        %1562 = vmatpush2.bf16.msra.mxu0 %v1191
        %1563 = vmatprep.subr.bf16.mxu0 %v1188
        %1564 = vmatpush2.bf16.msra.mxu0 %v1187
        %1565 = vmatprep.subr.bf16.mxu0 %v1184
        %1566 = vmatpush2.bf16.msra.mxu0 %v1183
        %1567 = vmatprep.subr.bf16.mxu0 %v1180
        %1568 = vmatpush2.bf16.msra.mxu0 %v1179
        %1569 = vmatprep.subr.bf16.mxu0 %v1176
        %1570 = vmatpush2.bf16.msra.mxu0 %v1175
        %1571 = vmatprep.mubr.bf16.mxu0 %v331
        %1572 = vmatmul.mubr.bf16.gmra.mxu0 %v330
        %v1573 = vpop.f32.mrf.mxu0
        %v1574 = vadd.f32 %v538, %v1573
        %v1575 = vpop.f32.mrf.mxu0
        %v1576 = vadd.f32 %v542, %v1575
        %v1577 = vpop.f32.mrf.mxu0
        %v1578 = vadd.f32 %v538, %v1577
        %v1579 = vpop.f32.mrf.mxu0
        %v1580 = vadd.f32 %v542, %v1579
        %1581 = vdwg.mxu0
        %1582 = vmatprep.subr.bf16.mxu0 %v1236
        %1583 = vmatpush1.bf16.msra.mxu0 %v1235
        %1584 = vmatprep.subr.bf16.mxu0 %v1232
        %1585 = vmatpush1.bf16.msra.mxu0 %v1231
        %1586 = vmatprep.subr.bf16.mxu0 %v1228
        %1587 = vmatpush1.bf16.msra.mxu0 %v1227
        %1588 = vmatprep.subr.bf16.mxu0 %v1224
        %1589 = vmatpush1.bf16.msra.mxu0 %v1223
        %1590 = vmatprep.subr.bf16.mxu0 %v1220
        %1591 = vmatpush1.bf16.msra.mxu0 %v1219
        %1592 = vmatprep.subr.bf16.mxu0 %v1216
        %1593 = vmatpush1.bf16.msra.mxu0 %v1215
        %1594 = vmatprep.subr.bf16.mxu0 %v1212
        %1595 = vmatpush1.bf16.msra.mxu0 %v1211
        %1596 = vmatprep.subr.bf16.mxu0 %v1208
        %1597 = vmatpush1.bf16.msra.mxu0 %v1207
        %1598 = vmatprep.subr.bf16.mxu0 %v1268
        %1599 = vmatpush2.bf16.msra.mxu0 %v1267
        %1600 = vmatprep.subr.bf16.mxu0 %v1264
        %1601 = vmatpush2.bf16.msra.mxu0 %v1263
        %1602 = vmatprep.subr.bf16.mxu0 %v1260
        %1603 = vmatpush2.bf16.msra.mxu0 %v1259
        %1604 = vmatprep.subr.bf16.mxu0 %v1256
        %1605 = vmatpush2.bf16.msra.mxu0 %v1255
        %1606 = vmatprep.subr.bf16.mxu0 %v1252
        %1607 = vmatpush2.bf16.msra.mxu0 %v1251
        %1608 = vmatprep.subr.bf16.mxu0 %v1248
        %1609 = vmatpush2.bf16.msra.mxu0 %v1247
        %1610 = vmatprep.subr.bf16.mxu0 %v1244
        %1611 = vmatpush2.bf16.msra.mxu0 %v1243
        %1612 = vmatprep.subr.bf16.mxu0 %v1240
        %1613 = vmatpush2.bf16.msra.mxu0 %v1239
        %1614 = vmatprep.mubr.bf16.mxu0 %v333
        %1615 = vmatmul.mubr.bf16.gmra.mxu0 %v332
        %v1616 = vpop.f32.mrf.mxu0
        %v1617 = vadd.f32 %v1574, %v1616
        %v1618 = vpop.f32.mrf.mxu0
        %v1619 = vadd.f32 %v1576, %v1618
        %v1620 = vpop.f32.mrf.mxu0
        %v1621 = vadd.f32 %v1578, %v1620
        %v1622 = vpop.f32.mrf.mxu0
        %v1623 = vadd.f32 %v1580, %v1622
        %1624 = vdwg.mxu0
        %1625 = vmatprep.subr.bf16.mxu0 %v1300
        %1626 = vmatpush1.bf16.msra.mxu0 %v1299
        %1627 = vmatprep.subr.bf16.mxu0 %v1296
        %1628 = vmatpush1.bf16.msra.mxu0 %v1295
        %1629 = vmatprep.subr.bf16.mxu0 %v1292
        %1630 = vmatpush1.bf16.msra.mxu0 %v1291
        %1631 = vmatprep.subr.bf16.mxu0 %v1288
        %1632 = vmatpush1.bf16.msra.mxu0 %v1287
        %1633 = vmatprep.subr.bf16.mxu0 %v1284
        %1634 = vmatpush1.bf16.msra.mxu0 %v1283
        %1635 = vmatprep.subr.bf16.mxu0 %v1280
        %1636 = vmatpush1.bf16.msra.mxu0 %v1279
        %1637 = vmatprep.subr.bf16.mxu0 %v1276
        %1638 = vmatpush1.bf16.msra.mxu0 %v1275
        %1639 = vmatprep.subr.bf16.mxu0 %v1272
        %1640 = vmatpush1.bf16.msra.mxu0 %v1271
        %1641 = vmatprep.subr.bf16.mxu0 %v1332
        %1642 = vmatpush2.bf16.msra.mxu0 %v1331
        %1643 = vmatprep.subr.bf16.mxu0 %v1328
        %1644 = vmatpush2.bf16.msra.mxu0 %v1327
        %1645 = vmatprep.subr.bf16.mxu0 %v1324
        %1646 = vmatpush2.bf16.msra.mxu0 %v1323
        %1647 = vmatprep.subr.bf16.mxu0 %v1320
        %1648 = vmatpush2.bf16.msra.mxu0 %v1319
        %1649 = vmatprep.subr.bf16.mxu0 %v1316
        %1650 = vmatpush2.bf16.msra.mxu0 %v1315
        %1651 = vmatprep.subr.bf16.mxu0 %v1312
        %1652 = vmatpush2.bf16.msra.mxu0 %v1311
        %1653 = vmatprep.subr.bf16.mxu0 %v1308
        %1654 = vmatpush2.bf16.msra.mxu0 %v1307
        %1655 = vmatprep.subr.bf16.mxu0 %v1304
        %1656 = vmatpush2.bf16.msra.mxu0 %v1303
        %1657 = vmatprep.mubr.bf16.mxu0 %v335
        %1658 = vmatmul.mubr.bf16.gmra.mxu0 %v334
        %v1659 = vpop.f32.mrf.mxu0
        %v1660 = vadd.f32 %v1617, %v1659
        %v1661 = vpop.f32.mrf.mxu0
        %v1662 = vadd.f32 %v1619, %v1661
        %v1663 = vpop.f32.mrf.mxu0
        %v1664 = vadd.f32 %v1621, %v1663
        %v1665 = vpop.f32.mrf.mxu0
        %v1666 = vadd.f32 %v1623, %v1665
        %1667 = vdwg.mxu0
        %1668 = vmatprep.subr.bf16.mxu0 0
        %1669 = vmatpush1.bf16.msra.mxu0 0
        %1670 = vmatprep.subr.bf16.mxu0 0
        %1671 = vmatpush1.bf16.msra.mxu0 0
        %1672 = vmatprep.subr.bf16.mxu0 0
        %1673 = vmatpush1.bf16.msra.mxu0 0
        %1674 = vmatprep.subr.bf16.mxu0 0
        %1675 = vmatpush1.bf16.msra.mxu0 0
        %1676 = vmatprep.subr.bf16.mxu0 0
        %1677 = vmatpush1.bf16.msra.mxu0 0
        %1678 = vmatprep.subr.bf16.mxu0 0
        %1679 = vmatpush1.bf16.msra.mxu0 0
        %1680 = vmatprep.subr.bf16.mxu0 0
        %1681 = vmatpush1.bf16.msra.mxu0 0
        %1682 = vmatprep.subr.bf16.mxu0 %v1336
        %1683 = vmatpush1.bf16.msra.mxu0 %v1335
        %1684 = vmatprep.subr.bf16.mxu0 0
        %1685 = vmatpush2.bf16.msra.mxu0 0
        %1686 = vmatprep.subr.bf16.mxu0 0
        %1687 = vmatpush2.bf16.msra.mxu0 0
        %1688 = vmatprep.subr.bf16.mxu0 0
        %1689 = vmatpush2.bf16.msra.mxu0 0
        %1690 = vmatprep.subr.bf16.mxu0 0
        %1691 = vmatpush2.bf16.msra.mxu0 0
        %1692 = vmatprep.subr.bf16.mxu0 0
        %1693 = vmatpush2.bf16.msra.mxu0 0
        %1694 = vmatprep.subr.bf16.mxu0 0
        %1695 = vmatpush2.bf16.msra.mxu0 0
        %1696 = vmatprep.subr.bf16.mxu0 0
        %1697 = vmatpush2.bf16.msra.mxu0 0
        %1698 = vmatprep.subr.bf16.mxu0 0
        %1699 = vmatpush2.bf16.msra.mxu0 0
        %1700 = vmatprep.mubr.bf16.mxu0 0
        %1701 = vmatmul.mubr.bf16.gmra.mxu0 %v1537
        %v1702 = vpop.f32.mrf.mxu0
        %v1703 = vadd.f32 %v1660, %v1702
        %v1704 = vpop.f32.mrf.mxu0
        %v1705 = vadd.f32 %v1662, %v1704
        %v1706 = vpop.f32.mrf.mxu0
        %v1707 = vadd.f32 %v1664, %v1706
        %v1708 = vpop.f32.mrf.mxu0
        %v1709 = vadd.f32 %v1666, %v1708
        %1710 = vdwg.mxu0
        %1711 = vmatprep.subr.bf16.mxu0 %v1174
        %1712 = vmatpush1.bf16.msra.mxu0 %v1173
        %1713 = vmatprep.subr.bf16.mxu0 %v1170
        %1714 = vmatpush1.bf16.msra.mxu0 %v1169
        %1715 = vmatprep.subr.bf16.mxu0 %v1166
        %1716 = vmatpush1.bf16.msra.mxu0 %v1165
        %1717 = vmatprep.subr.bf16.mxu0 %v1162
        %1718 = vmatpush1.bf16.msra.mxu0 %v1161
        %1719 = vmatprep.subr.bf16.mxu0 %v1158
        %1720 = vmatpush1.bf16.msra.mxu0 %v1157
        %1721 = vmatprep.subr.bf16.mxu0 %v1154
        %1722 = vmatpush1.bf16.msra.mxu0 %v1153
        %1723 = vmatprep.subr.bf16.mxu0 %v1150
        %1724 = vmatpush1.bf16.msra.mxu0 %v1149
        %1725 = vmatprep.subr.bf16.mxu0 %v1146
        %1726 = vmatpush1.bf16.msra.mxu0 %v1145
        %1727 = vmatprep.subr.bf16.mxu0 %v1206
        %1728 = vmatpush2.bf16.msra.mxu0 %v1205
        %1729 = vmatprep.subr.bf16.mxu0 %v1202
        %1730 = vmatpush2.bf16.msra.mxu0 %v1201
        %1731 = vmatprep.subr.bf16.mxu0 %v1198
        %1732 = vmatpush2.bf16.msra.mxu0 %v1197
        %1733 = vmatprep.subr.bf16.mxu0 %v1194
        %1734 = vmatpush2.bf16.msra.mxu0 %v1193
        %1735 = vmatprep.subr.bf16.mxu0 %v1190
        %1736 = vmatpush2.bf16.msra.mxu0 %v1189
        %1737 = vmatprep.subr.bf16.mxu0 %v1186
        %1738 = vmatpush2.bf16.msra.mxu0 %v1185
        %1739 = vmatprep.subr.bf16.mxu0 %v1182
        %1740 = vmatpush2.bf16.msra.mxu0 %v1181
        %1741 = vmatprep.subr.bf16.mxu0 %v1178
        %1742 = vmatpush2.bf16.msra.mxu0 %v1177
        %1743 = vmatprep.mubr.bf16.mxu0 %v331
        %1744 = vmatmul.mubr.bf16.gmra.mxu0 %v330
        %v1745 = vpop.f32.mrf.mxu0
        %v1746 = vadd.f32 %v546, %v1745
        %v1747 = vpop.f32.mrf.mxu0
        %v1748 = vadd.f32 %v550, %v1747
        %v1749 = vpop.f32.mrf.mxu0
        %v1750 = vadd.f32 %v546, %v1749
        %v1751 = vpop.f32.mrf.mxu0
        %v1752 = vadd.f32 %v550, %v1751
        %1753 = vdwg.mxu0
        %1754 = vmatprep.subr.bf16.mxu0 %v1238
        %1755 = vmatpush1.bf16.msra.mxu0 %v1237
        %1756 = vmatprep.subr.bf16.mxu0 %v1234
        %1757 = vmatpush1.bf16.msra.mxu0 %v1233
        %1758 = vmatprep.subr.bf16.mxu0 %v1230
        %1759 = vmatpush1.bf16.msra.mxu0 %v1229
        %1760 = vmatprep.subr.bf16.mxu0 %v1226
        %1761 = vmatpush1.bf16.msra.mxu0 %v1225
        %1762 = vmatprep.subr.bf16.mxu0 %v1222
        %1763 = vmatpush1.bf16.msra.mxu0 %v1221
        %1764 = vmatprep.subr.bf16.mxu0 %v1218
        %1765 = vmatpush1.bf16.msra.mxu0 %v1217
        %1766 = vmatprep.subr.bf16.mxu0 %v1214
        %1767 = vmatpush1.bf16.msra.mxu0 %v1213
        %1768 = vmatprep.subr.bf16.mxu0 %v1210
        %1769 = vmatpush1.bf16.msra.mxu0 %v1209
        %1770 = vmatprep.subr.bf16.mxu0 %v1270
        %1771 = vmatpush2.bf16.msra.mxu0 %v1269
        %1772 = vmatprep.subr.bf16.mxu0 %v1266
        %1773 = vmatpush2.bf16.msra.mxu0 %v1265
        %1774 = vmatprep.subr.bf16.mxu0 %v1262
        %1775 = vmatpush2.bf16.msra.mxu0 %v1261
        %1776 = vmatprep.subr.bf16.mxu0 %v1258
        %1777 = vmatpush2.bf16.msra.mxu0 %v1257
        %1778 = vmatprep.subr.bf16.mxu0 %v1254
        %1779 = vmatpush2.bf16.msra.mxu0 %v1253
        %1780 = vmatprep.subr.bf16.mxu0 %v1250
        %1781 = vmatpush2.bf16.msra.mxu0 %v1249
        %1782 = vmatprep.subr.bf16.mxu0 %v1246
        %1783 = vmatpush2.bf16.msra.mxu0 %v1245
        %1784 = vmatprep.subr.bf16.mxu0 %v1242
        %1785 = vmatpush2.bf16.msra.mxu0 %v1241
        %1786 = vmatprep.mubr.bf16.mxu0 %v333
        %1787 = vmatmul.mubr.bf16.gmra.mxu0 %v332
        %v1788 = vpop.f32.mrf.mxu0
        %v1789 = vadd.f32 %v1746, %v1788
        %v1790 = vpop.f32.mrf.mxu0
        %v1791 = vadd.f32 %v1748, %v1790
        %v1792 = vpop.f32.mrf.mxu0
        %v1793 = vadd.f32 %v1750, %v1792
        %v1794 = vpop.f32.mrf.mxu0
        %v1795 = vadd.f32 %v1752, %v1794
        %1796 = vdwg.mxu0
        %1797 = vmatprep.subr.bf16.mxu0 %v1302
        %1798 = vmatpush1.bf16.msra.mxu0 %v1301
        %1799 = vmatprep.subr.bf16.mxu0 %v1298
        %1800 = vmatpush1.bf16.msra.mxu0 %v1297
        %1801 = vmatprep.subr.bf16.mxu0 %v1294
        %1802 = vmatpush1.bf16.msra.mxu0 %v1293
        %1803 = vmatprep.subr.bf16.mxu0 %v1290
        %1804 = vmatpush1.bf16.msra.mxu0 %v1289
        %1805 = vmatprep.subr.bf16.mxu0 %v1286
        %1806 = vmatpush1.bf16.msra.mxu0 %v1285
        %1807 = vmatprep.subr.bf16.mxu0 %v1282
        %1808 = vmatpush1.bf16.msra.mxu0 %v1281
        %1809 = vmatprep.subr.bf16.mxu0 %v1278
        %1810 = vmatpush1.bf16.msra.mxu0 %v1277
        %1811 = vmatprep.subr.bf16.mxu0 %v1274
        %1812 = vmatpush1.bf16.msra.mxu0 %v1273
        %1813 = vmatprep.subr.bf16.mxu0 %v1334
        %1814 = vmatpush2.bf16.msra.mxu0 %v1333
        %1815 = vmatprep.subr.bf16.mxu0 %v1330
        %1816 = vmatpush2.bf16.msra.mxu0 %v1329
        %1817 = vmatprep.subr.bf16.mxu0 %v1326
        %1818 = vmatpush2.bf16.msra.mxu0 %v1325
        %1819 = vmatprep.subr.bf16.mxu0 %v1322
        %1820 = vmatpush2.bf16.msra.mxu0 %v1321
        %1821 = vmatprep.subr.bf16.mxu0 %v1318
        %1822 = vmatpush2.bf16.msra.mxu0 %v1317
        %1823 = vmatprep.subr.bf16.mxu0 %v1314
        %1824 = vmatpush2.bf16.msra.mxu0 %v1313
        %1825 = vmatprep.subr.bf16.mxu0 %v1310
        %1826 = vmatpush2.bf16.msra.mxu0 %v1309
        %1827 = vmatprep.subr.bf16.mxu0 %v1306
        %1828 = vmatpush2.bf16.msra.mxu0 %v1305
        %1829 = vmatprep.mubr.bf16.mxu0 %v335
        %1830 = vmatmul.mubr.bf16.gmra.mxu0 %v334
        %v1831 = vpop.f32.mrf.mxu0
        %v1832 = vadd.f32 %v1789, %v1831
        %v1833 = vpop.f32.mrf.mxu0
        %v1834 = vadd.f32 %v1791, %v1833
        %v1835 = vpop.f32.mrf.mxu0
        %v1836 = vadd.f32 %v1793, %v1835
        %v1837 = vpop.f32.mrf.mxu0
        %v1838 = vadd.f32 %v1795, %v1837
        %1839 = vdwg.mxu0
        %1840 = vmatprep.subr.bf16.mxu0 0
        %1841 = vmatpush1.bf16.msra.mxu0 0
        %1842 = vmatprep.subr.bf16.mxu0 0
        %1843 = vmatpush1.bf16.msra.mxu0 0
        %1844 = vmatprep.subr.bf16.mxu0 0
        %1845 = vmatpush1.bf16.msra.mxu0 0
        %1846 = vmatprep.subr.bf16.mxu0 0
        %1847 = vmatpush1.bf16.msra.mxu0 0
        %1848 = vmatprep.subr.bf16.mxu0 0
        %1849 = vmatpush1.bf16.msra.mxu0 0
        %1850 = vmatprep.subr.bf16.mxu0 0
        %1851 = vmatpush1.bf16.msra.mxu0 0
        %1852 = vmatprep.subr.bf16.mxu0 0
        %1853 = vmatpush1.bf16.msra.mxu0 0
        %1854 = vmatprep.subr.bf16.mxu0 %v1338
        %1855 = vmatpush1.bf16.msra.mxu0 %v1337
        %1856 = vmatprep.subr.bf16.mxu0 0
        %1857 = vmatpush2.bf16.msra.mxu0 0
        %1858 = vmatprep.subr.bf16.mxu0 0
        %1859 = vmatpush2.bf16.msra.mxu0 0
        %1860 = vmatprep.subr.bf16.mxu0 0
        %1861 = vmatpush2.bf16.msra.mxu0 0
        %1862 = vmatprep.subr.bf16.mxu0 0
        %1863 = vmatpush2.bf16.msra.mxu0 0
        %1864 = vmatprep.subr.bf16.mxu0 0
        %1865 = vmatpush2.bf16.msra.mxu0 0
        %1866 = vmatprep.subr.bf16.mxu0 0
        %1867 = vmatpush2.bf16.msra.mxu0 0
        %1868 = vmatprep.subr.bf16.mxu0 0
        %1869 = vmatpush2.bf16.msra.mxu0 0
        %1870 = vmatprep.subr.bf16.mxu0 0
        %1871 = vmatpush2.bf16.msra.mxu0 0
        %1872 = vmatprep.mubr.bf16.mxu0 0
        %1873 = vmatmul.mubr.bf16.gmra.mxu0 %v1537
        %v1874 = vpop.f32.mrf.mxu0
        %v1875 = vadd.f32 %v1832, %v1874
        %v1876 = vpop.f32.mrf.mxu0
        %v1877 = vadd.f32 %v1834, %v1876
        %v1878 = vpop.f32.mrf.mxu0
        %v1879 = vadd.f32 %v1836, %v1878
        %v1880 = vpop.f32.mrf.mxu0
        %v1881 = vadd.f32 %v1838, %v1880
        %1882 = vdwg.mxu0
        %v1883 = vmax.f32 %v1703, 0.0
        %v1884 = vmax.f32 %v1705, 0.0
        %v1885 = vmax.f32 %v1875, 0.0
        %v1886 = vmax.f32 %v1877, 0.0
        %v1887 = vmax.f32 %v1707, 0.0
        %v1888 = vmax.f32 %v1709, 0.0
        %v1889 = vmax.f32 %v1879, 0.0
        %v1890 = vmax.f32 %v1881, 0.0
        %v1891 = vpack.c.bf16 %v1887, %v1883
        %v1892 = vpack.c.bf16 %v1888, %v1884
        %v1893 = vpack.c.bf16 %v1889, %v1885
        %v1894 = vpack.c.bf16 %v1890, %v1886
        %v1895 = vld [vmem:[#allocation4] sm:$0xff]
        %v1896 = vld [vmem:[#allocation4 + $0x8] sm:$0xff]
        %v1897 = vld [vmem:[#allocation4 + $0x10] sm:$0xff]
        %v1898 = vld [vmem:[#allocation4 + $0x18] sm:$0xff]
        %v1899 = vld [vmem:[#allocation4 + $0x20] sm:$0xff]
        %v1900 = vld [vmem:[#allocation4 + $0x28] sm:$0xff]
        %v1901 = vld [vmem:[#allocation4 + $0x30] sm:$0xff]
        %v1902 = vld [vmem:[#allocation4 + $0x38] sm:$0xff]
        %v1903 = vld [vmem:[#allocation4 + $0x40] sm:$0xff]
        %v1904 = vld [vmem:[#allocation4 + $0x48] sm:$0xff]
        %v1905 = vld [vmem:[#allocation4 + $0x50] sm:$0xff]
        %v1906 = vld [vmem:[#allocation4 + $0x58] sm:$0xff]
        %v1907 = vld [vmem:[#allocation4 + $0x60] sm:$0xff]
        %v1908 = vld [vmem:[#allocation4 + $0x68] sm:$0xff]
        %v1909 = vld [vmem:[#allocation4 + $0x70] sm:$0xff]
        %v1910 = vld [vmem:[#allocation4 + $0x78] sm:$0xff]
        %v1911 = vld [vmem:[#allocation4 + $0x80] sm:$0xff]
        %v1912 = vld [vmem:[#allocation4 + $0x88] sm:$0xff]
        %v1913 = vld [vmem:[#allocation4 + $0x90] sm:$0xff]
        %v1914 = vld [vmem:[#allocation4 + $0x98] sm:$0xff]
        %v1915 = vld [vmem:[#allocation4 + $0xa0] sm:$0xff]
        %v1916 = vld [vmem:[#allocation4 + $0xa8] sm:$0xff]
        %v1917 = vld [vmem:[#allocation4 + $0xb0] sm:$0xff]
        %v1918 = vld [vmem:[#allocation4 + $0xb8] sm:$0xff]
        %v1919 = vld [vmem:[#allocation4 + $0xc0] sm:$0xff]
        %v1920 = vld [vmem:[#allocation4 + $0xc8] sm:$0xff]
        %v1921 = vld [vmem:[#allocation4 + $0xd0] sm:$0xff]
        %v1922 = vld [vmem:[#allocation4 + $0xd8] sm:$0xff]
        %v1923 = vld [vmem:[#allocation4 + $0xe0] sm:$0xff]
        %v1924 = vld [vmem:[#allocation4 + $0xe8] sm:$0xff]
        %v1925 = vld [vmem:[#allocation4 + $0xf0] sm:$0xff]
        %v1926 = vld [vmem:[#allocation4 + $0xf8] sm:$0xff]
        %v1927 = vld [vmem:[#allocation4 + $0x100] sm:$0xff]
        %v1928 = vld [vmem:[#allocation4 + $0x108] sm:$0xff]
        %v1929 = vld [vmem:[#allocation4 + $0x110] sm:$0xff]
        %v1930 = vld [vmem:[#allocation4 + $0x118] sm:$0xff]
        %v1931 = vld [vmem:[#allocation4 + $0x120] sm:$0xff]
        %v1932 = vld [vmem:[#allocation4 + $0x128] sm:$0xff]
        %v1933 = vld [vmem:[#allocation4 + $0x130] sm:$0xff]
        %v1934 = vld [vmem:[#allocation4 + $0x138] sm:$0xff]
        %v1935 = vld [vmem:[#allocation4 + $0x140] sm:$0xff]
        %v1936 = vld [vmem:[#allocation4 + $0x148] sm:$0xff]
        %v1937 = vld [vmem:[#allocation4 + $0x150] sm:$0xff]
        %v1938 = vld [vmem:[#allocation4 + $0x158] sm:$0xff]
        %v1939 = vld [vmem:[#allocation4 + $0x160] sm:$0xff]
        %v1940 = vld [vmem:[#allocation4 + $0x168] sm:$0xff]
        %v1941 = vld [vmem:[#allocation4 + $0x170] sm:$0xff]
        %v1942 = vld [vmem:[#allocation4 + $0x178] sm:$0xff]
        %v1943 = vld [vmem:[#allocation4 + $0x180] sm:$0xff]
        %v1944 = vld [vmem:[#allocation4 + $0x188] sm:$0xff]
        %v1945 = vld [vmem:[#allocation4 + $0x190] sm:$0xff]
        %v1946 = vld [vmem:[#allocation4 + $0x198] sm:$0xff]
        %v1947 = vld [vmem:[#allocation4 + $0x1a0] sm:$0xff]
        %v1948 = vld [vmem:[#allocation4 + $0x1a8] sm:$0xff]
        %v1949 = vld [vmem:[#allocation4 + $0x1b0] sm:$0xff]
        %v1950 = vld [vmem:[#allocation4 + $0x1b8] sm:$0xff]
        %v1951 = vld [vmem:[#allocation4 + $0x1c0] sm:$0xff]
        %v1952 = vld [vmem:[#allocation4 + $0x1c8] sm:$0xff]
        %v1953 = vld [vmem:[#allocation4 + $0x1d0] sm:$0xff]
        %v1954 = vld [vmem:[#allocation4 + $0x1d8] sm:$0xff]
        %v1955 = vld [vmem:[#allocation4 + $0x1e0] sm:$0xff]
        %v1956 = vld [vmem:[#allocation4 + $0x1e8] sm:$0xff]
        %v1957 = vld [vmem:[#allocation4 + $0x1f0] sm:$0xff]
        %v1958 = vld [vmem:[#allocation4 + $0x1f8] sm:$0xff]
        %v1959 = vld [vmem:[#allocation4 + $0x200] sm:$0xff]
        %v1960 = vld [vmem:[#allocation4 + $0x208] sm:$0xff]
        %v1961 = vld [vmem:[#allocation4 + $0x210] sm:$0xff]
        %v1962 = vld [vmem:[#allocation4 + $0x218] sm:$0xff]
        %v1963 = vld [vmem:[#allocation4 + $0x220] sm:$0xff]
        %v1964 = vld [vmem:[#allocation4 + $0x228] sm:$0xff]
        %v1965 = vld [vmem:[#allocation4 + $0x230] sm:$0xff]
        %v1966 = vld [vmem:[#allocation4 + $0x238] sm:$0xff]
        %v1967 = vld [vmem:[#allocation4 + $0x240] sm:$0xff]
        %v1968 = vld [vmem:[#allocation4 + $0x248] sm:$0xff]
        %v1969 = vld [vmem:[#allocation4 + $0x250] sm:$0xff]
        %v1970 = vld [vmem:[#allocation4 + $0x258] sm:$0xff]
        %v1971 = vld [vmem:[#allocation4 + $0x260] sm:$0xff]
        %v1972 = vld [vmem:[#allocation4 + $0x268] sm:$0xff]
        %v1973 = vld [vmem:[#allocation4 + $0x270] sm:$0xff]
        %v1974 = vld [vmem:[#allocation4 + $0x278] sm:$0xff]
        %v1975 = vld [vmem:[#allocation4 + $0x280] sm:$0xff]
        %v1976 = vld [vmem:[#allocation4 + $0x288] sm:$0xff]
        %v1977 = vld [vmem:[#allocation4 + $0x290] sm:$0xff]
        %v1978 = vld [vmem:[#allocation4 + $0x298] sm:$0xff]
        %v1979 = vld [vmem:[#allocation4 + $0x2a0] sm:$0xff]
        %v1980 = vld [vmem:[#allocation4 + $0x2a8] sm:$0xff]
        %v1981 = vld [vmem:[#allocation4 + $0x2b0] sm:$0xff]
        %v1982 = vld [vmem:[#allocation4 + $0x2b8] sm:$0xff]
        %v1983 = vld [vmem:[#allocation4 + $0x2c0] sm:$0xff]
        %v1984 = vld [vmem:[#allocation4 + $0x2c8] sm:$0xff]
        %v1985 = vld [vmem:[#allocation4 + $0x2d0] sm:$0xff]
        %v1986 = vld [vmem:[#allocation4 + $0x2d8] sm:$0xff]
        %v1987 = vld [vmem:[#allocation4 + $0x2e0] sm:$0xff]
        %v1988 = vld [vmem:[#allocation4 + $0x2e8] sm:$0xff]
        %v1989 = vld [vmem:[#allocation4 + $0x2f0] sm:$0xff]
        %v1990 = vld [vmem:[#allocation4 + $0x2f8] sm:$0xff]
        %v1991 = vld [vmem:[#allocation4 + $0x300] sm:$0xff]
        %v1992 = vld [vmem:[#allocation4 + $0x308] sm:$0xff]
        %v1993 = vld [vmem:[#allocation4 + $0x310] sm:$0xff]
        %v1994 = vld [vmem:[#allocation4 + $0x318] sm:$0xff]
        %v1995 = vld [vmem:[#allocation4 + $0x320] sm:$0xff]
        %v1996 = vld [vmem:[#allocation4 + $0x328] sm:$0xff]
        %v1997 = vld [vmem:[#allocation4 + $0x330] sm:$0xff]
        %v1998 = vld [vmem:[#allocation4 + $0x338] sm:$0xff]
        %v1999 = vld [vmem:[#allocation4 + $0x340] sm:$0xff]
        %v2000 = vld [vmem:[#allocation4 + $0x348] sm:$0xff]
        %v2001 = vld [vmem:[#allocation4 + $0x350] sm:$0xff]
        %v2002 = vld [vmem:[#allocation4 + $0x358] sm:$0xff]
        %v2003 = vld [vmem:[#allocation4 + $0x360] sm:$0xff]
        %v2004 = vld [vmem:[#allocation4 + $0x368] sm:$0xff]
        %v2005 = vld [vmem:[#allocation4 + $0x370] sm:$0xff]
        %v2006 = vld [vmem:[#allocation4 + $0x378] sm:$0xff]
        %v2007 = vld [vmem:[#allocation4 + $0x380] sm:$0xff]
        %v2008 = vld [vmem:[#allocation4 + $0x388] sm:$0xff]
        %v2009 = vld [vmem:[#allocation4 + $0x390] sm:$0xff]
        %v2010 = vld [vmem:[#allocation4 + $0x398] sm:$0xff]
        %v2011 = vld [vmem:[#allocation4 + $0x3a0] sm:$0xff]
        %v2012 = vld [vmem:[#allocation4 + $0x3a8] sm:$0xff]
        %v2013 = vld [vmem:[#allocation4 + $0x3b0] sm:$0xff]
        %v2014 = vld [vmem:[#allocation4 + $0x3b8] sm:$0xff]
        %v2015 = vld [vmem:[#allocation4 + $0x3c0] sm:$0xff]
        %v2016 = vld [vmem:[#allocation4 + $0x3c8] sm:$0xff]
        %v2017 = vld [vmem:[#allocation4 + $0x3d0] sm:$0xff]
        %v2018 = vld [vmem:[#allocation4 + $0x3d8] sm:$0xff]
        %v2019 = vld [vmem:[#allocation4 + $0x3e0] sm:$0xff]
        %v2020 = vld [vmem:[#allocation4 + $0x3e8] sm:$0xff]
        %v2021 = vld [vmem:[#allocation4 + $0x3f0] sm:$0xff]
        %v2022 = vld [vmem:[#allocation4 + $0x3f8] sm:$0xff]
        %v2023 = vld [vmem:[%s4] sm:$0xf]
        %v2025 = vlaneseq
        %v2026 = vshrl.u32 %v2025, 7
        %v2027 = vsub.s32 0, %v2026
        %v2028 = vrot.slane %v2023, %v2027
        %v2029 = vlaneseq
        %v2030 = vshrl.u32 %v2029, 7
        %v2031 = vsub.s32 1, %v2030
        %v2032 = vrot.slane %v2023, %v2031
        %v2033 = vlaneseq
        %v2034 = vshrl.u32 %v2033, 7
        %v2035 = vsub.s32 2, %v2034
        %v2036 = vrot.slane %v2023, %v2035
        %v2037 = vlaneseq
        %v2038 = vshrl.u32 %v2037, 7
        %v2039 = vsub.s32 3, %v2038
        %v2040 = vrot.slane %v2023, %v2039
        %v2173 = vunpack.c.l.b16 %v1895
        %v2174 = vunpack.c.h.b16 %v1895
        %v2175 = vunpack.c.l.b16 %v1896
        %v2176 = vunpack.c.h.b16 %v1896
        %v2177 = vunpack.c.l.b16 %v1897
        %v2178 = vunpack.c.h.b16 %v1897
        %v2179 = vunpack.c.l.b16 %v1898
        %v2180 = vunpack.c.h.b16 %v1898
        %v2181 = vunpack.c.l.b16 %v1899
        %v2182 = vunpack.c.h.b16 %v1899
        %v2183 = vunpack.c.l.b16 %v1900
        %v2184 = vunpack.c.h.b16 %v1900
        %v2185 = vunpack.c.l.b16 %v1901
        %v2186 = vunpack.c.h.b16 %v1901
        %v2187 = vunpack.c.l.b16 %v1902
        %v2188 = vunpack.c.h.b16 %v1902
        %v2189 = vunpack.c.l.b16 %v1903
        %v2190 = vunpack.c.h.b16 %v1903
        %v2191 = vunpack.c.l.b16 %v1904
        %v2192 = vunpack.c.h.b16 %v1904
        %v2193 = vunpack.c.l.b16 %v1905
        %v2194 = vunpack.c.h.b16 %v1905
        %v2195 = vunpack.c.l.b16 %v1906
        %v2196 = vunpack.c.h.b16 %v1906
        %v2197 = vunpack.c.l.b16 %v1907
        %v2198 = vunpack.c.h.b16 %v1907
        %v2199 = vunpack.c.l.b16 %v1908
        %v2200 = vunpack.c.h.b16 %v1908
        %v2201 = vunpack.c.l.b16 %v1909
        %v2202 = vunpack.c.h.b16 %v1909
        %v2203 = vunpack.c.l.b16 %v1910
        %v2204 = vunpack.c.h.b16 %v1910
        %v2205 = vunpack.c.l.b16 %v1911
        %v2206 = vunpack.c.h.b16 %v1911
        %v2207 = vunpack.c.l.b16 %v1912
        %v2208 = vunpack.c.h.b16 %v1912
        %v2209 = vunpack.c.l.b16 %v1913
        %v2210 = vunpack.c.h.b16 %v1913
        %v2211 = vunpack.c.l.b16 %v1914
        %v2212 = vunpack.c.h.b16 %v1914
        %v2213 = vunpack.c.l.b16 %v1915
        %v2214 = vunpack.c.h.b16 %v1915
        %v2215 = vunpack.c.l.b16 %v1916
        %v2216 = vunpack.c.h.b16 %v1916
        %v2217 = vunpack.c.l.b16 %v1917
        %v2218 = vunpack.c.h.b16 %v1917
        %v2219 = vunpack.c.l.b16 %v1918
        %v2220 = vunpack.c.h.b16 %v1918
        %v2221 = vunpack.c.l.b16 %v1919
        %v2222 = vunpack.c.h.b16 %v1919
        %v2223 = vunpack.c.l.b16 %v1920
        %v2224 = vunpack.c.h.b16 %v1920
        %v2225 = vunpack.c.l.b16 %v1921
        %v2226 = vunpack.c.h.b16 %v1921
        %v2227 = vunpack.c.l.b16 %v1922
        %v2228 = vunpack.c.h.b16 %v1922
        %v2229 = vunpack.c.l.b16 %v1923
        %v2230 = vunpack.c.h.b16 %v1923
        %v2231 = vunpack.c.l.b16 %v1924
        %v2232 = vunpack.c.h.b16 %v1924
        %v2233 = vunpack.c.l.b16 %v1925
        %v2234 = vunpack.c.h.b16 %v1925
        %v2235 = vunpack.c.l.b16 %v1926
        %v2236 = vunpack.c.h.b16 %v1926
        %v2237 = vunpack.c.l.b16 %v1927
        %v2238 = vunpack.c.h.b16 %v1927
        %v2239 = vunpack.c.l.b16 %v1928
        %v2240 = vunpack.c.h.b16 %v1928
        %v2241 = vunpack.c.l.b16 %v1929
        %v2242 = vunpack.c.h.b16 %v1929
        %v2243 = vunpack.c.l.b16 %v1930
        %v2244 = vunpack.c.h.b16 %v1930
        %v2245 = vunpack.c.l.b16 %v1931
        %v2246 = vunpack.c.h.b16 %v1931
        %v2247 = vunpack.c.l.b16 %v1932
        %v2248 = vunpack.c.h.b16 %v1932
        %v2249 = vunpack.c.l.b16 %v1933
        %v2250 = vunpack.c.h.b16 %v1933
        %v2251 = vunpack.c.l.b16 %v1934
        %v2252 = vunpack.c.h.b16 %v1934
        %v2253 = vunpack.c.l.b16 %v1935
        %v2254 = vunpack.c.h.b16 %v1935
        %v2255 = vunpack.c.l.b16 %v1936
        %v2256 = vunpack.c.h.b16 %v1936
        %v2257 = vunpack.c.l.b16 %v1937
        %v2258 = vunpack.c.h.b16 %v1937
        %v2259 = vunpack.c.l.b16 %v1938
        %v2260 = vunpack.c.h.b16 %v1938
        %v2261 = vunpack.c.l.b16 %v1939
        %v2262 = vunpack.c.h.b16 %v1939
        %v2263 = vunpack.c.l.b16 %v1940
        %v2264 = vunpack.c.h.b16 %v1940
        %v2265 = vunpack.c.l.b16 %v1941
        %v2266 = vunpack.c.h.b16 %v1941
        %v2267 = vunpack.c.l.b16 %v1942
        %v2268 = vunpack.c.h.b16 %v1942
        %v2269 = vunpack.c.l.b16 %v1943
        %v2270 = vunpack.c.h.b16 %v1943
        %v2271 = vunpack.c.l.b16 %v1944
        %v2272 = vunpack.c.h.b16 %v1944
        %v2273 = vunpack.c.l.b16 %v1945
        %v2274 = vunpack.c.h.b16 %v1945
        %v2275 = vunpack.c.l.b16 %v1946
        %v2276 = vunpack.c.h.b16 %v1946
        %v2277 = vunpack.c.l.b16 %v1947
        %v2278 = vunpack.c.h.b16 %v1947
        %v2279 = vunpack.c.l.b16 %v1948
        %v2280 = vunpack.c.h.b16 %v1948
        %v2281 = vunpack.c.l.b16 %v1949
        %v2282 = vunpack.c.h.b16 %v1949
        %v2283 = vunpack.c.l.b16 %v1950
        %v2284 = vunpack.c.h.b16 %v1950
        %v2285 = vunpack.c.l.b16 %v1951
        %v2286 = vunpack.c.h.b16 %v1951
        %v2287 = vunpack.c.l.b16 %v1952
        %v2288 = vunpack.c.h.b16 %v1952
        %v2289 = vunpack.c.l.b16 %v1953
        %v2290 = vunpack.c.h.b16 %v1953
        %v2291 = vunpack.c.l.b16 %v1954
        %v2292 = vunpack.c.h.b16 %v1954
        %v2293 = vunpack.c.l.b16 %v1955
        %v2294 = vunpack.c.h.b16 %v1955
        %v2295 = vunpack.c.l.b16 %v1956
        %v2296 = vunpack.c.h.b16 %v1956
        %v2297 = vunpack.c.l.b16 %v1957
        %v2298 = vunpack.c.h.b16 %v1957
        %v2299 = vunpack.c.l.b16 %v1958
        %v2300 = vunpack.c.h.b16 %v1958
        %v2301 = vunpack.c.l.b16 %v1959
        %v2302 = vunpack.c.h.b16 %v1959
        %v2303 = vunpack.c.l.b16 %v1960
        %v2304 = vunpack.c.h.b16 %v1960
        %v2305 = vunpack.c.l.b16 %v1961
        %v2306 = vunpack.c.h.b16 %v1961
        %v2307 = vunpack.c.l.b16 %v1962
        %v2308 = vunpack.c.h.b16 %v1962
        %v2309 = vunpack.c.l.b16 %v1963
        %v2310 = vunpack.c.h.b16 %v1963
        %v2311 = vunpack.c.l.b16 %v1964
        %v2312 = vunpack.c.h.b16 %v1964
        %v2313 = vunpack.c.l.b16 %v1965
        %v2314 = vunpack.c.h.b16 %v1965
        %v2315 = vunpack.c.l.b16 %v1966
        %v2316 = vunpack.c.h.b16 %v1966
        %v2317 = vunpack.c.l.b16 %v1967
        %v2318 = vunpack.c.h.b16 %v1967
        %v2319 = vunpack.c.l.b16 %v1968
        %v2320 = vunpack.c.h.b16 %v1968
        %v2321 = vunpack.c.l.b16 %v1969
        %v2322 = vunpack.c.h.b16 %v1969
        %v2323 = vunpack.c.l.b16 %v1970
        %v2324 = vunpack.c.h.b16 %v1970
        %v2325 = vunpack.c.l.b16 %v1971
        %v2326 = vunpack.c.h.b16 %v1971
        %v2327 = vunpack.c.l.b16 %v1972
        %v2328 = vunpack.c.h.b16 %v1972
        %v2329 = vunpack.c.l.b16 %v1973
        %v2330 = vunpack.c.h.b16 %v1973
        %v2331 = vunpack.c.l.b16 %v1974
        %v2332 = vunpack.c.h.b16 %v1974
        %v2333 = vunpack.c.l.b16 %v1975
        %v2334 = vunpack.c.h.b16 %v1975
        %v2335 = vunpack.c.l.b16 %v1976
        %v2336 = vunpack.c.h.b16 %v1976
        %v2337 = vunpack.c.l.b16 %v1977
        %v2338 = vunpack.c.h.b16 %v1977
        %v2339 = vunpack.c.l.b16 %v1978
        %v2340 = vunpack.c.h.b16 %v1978
        %v2341 = vunpack.c.l.b16 %v1979
        %v2342 = vunpack.c.h.b16 %v1979
        %v2343 = vunpack.c.l.b16 %v1980
        %v2344 = vunpack.c.h.b16 %v1980
        %v2345 = vunpack.c.l.b16 %v1981
        %v2346 = vunpack.c.h.b16 %v1981
        %v2347 = vunpack.c.l.b16 %v1982
        %v2348 = vunpack.c.h.b16 %v1982
        %v2349 = vunpack.c.l.b16 %v1983
        %v2350 = vunpack.c.h.b16 %v1983
        %v2351 = vunpack.c.l.b16 %v1984
        %v2352 = vunpack.c.h.b16 %v1984
        %v2353 = vunpack.c.l.b16 %v1985
        %v2354 = vunpack.c.h.b16 %v1985
        %v2355 = vunpack.c.l.b16 %v1986
        %v2356 = vunpack.c.h.b16 %v1986
        %v2357 = vunpack.c.l.b16 %v1987
        %v2358 = vunpack.c.h.b16 %v1987
        %v2359 = vunpack.c.l.b16 %v1988
        %v2360 = vunpack.c.h.b16 %v1988
        %v2361 = vunpack.c.l.b16 %v1989
        %v2362 = vunpack.c.h.b16 %v1989
        %v2363 = vunpack.c.l.b16 %v1990
        %v2364 = vunpack.c.h.b16 %v1990
        %v2365 = vunpack.c.l.b16 %v1991
        %v2366 = vunpack.c.h.b16 %v1991
        %v2367 = vunpack.c.l.b16 %v1992
        %v2368 = vunpack.c.h.b16 %v1992
        %v2369 = vunpack.c.l.b16 %v1993
        %v2370 = vunpack.c.h.b16 %v1993
        %v2371 = vunpack.c.l.b16 %v1994
        %v2372 = vunpack.c.h.b16 %v1994
        %v2373 = vunpack.c.l.b16 %v1995
        %v2374 = vunpack.c.h.b16 %v1995
        %v2375 = vunpack.c.l.b16 %v1996
        %v2376 = vunpack.c.h.b16 %v1996
        %v2377 = vunpack.c.l.b16 %v1997
        %v2378 = vunpack.c.h.b16 %v1997
        %v2379 = vunpack.c.l.b16 %v1998
        %v2380 = vunpack.c.h.b16 %v1998
        %v2381 = vunpack.c.l.b16 %v1999
        %v2382 = vunpack.c.h.b16 %v1999
        %v2383 = vunpack.c.l.b16 %v2000
        %v2384 = vunpack.c.h.b16 %v2000
        %v2385 = vunpack.c.l.b16 %v2001
        %v2386 = vunpack.c.h.b16 %v2001
        %v2387 = vunpack.c.l.b16 %v2002
        %v2388 = vunpack.c.h.b16 %v2002
        %v2389 = vunpack.c.l.b16 %v2003
        %v2390 = vunpack.c.h.b16 %v2003
        %v2391 = vunpack.c.l.b16 %v2004
        %v2392 = vunpack.c.h.b16 %v2004
        %v2393 = vunpack.c.l.b16 %v2005
        %v2394 = vunpack.c.h.b16 %v2005
        %v2395 = vunpack.c.l.b16 %v2006
        %v2396 = vunpack.c.h.b16 %v2006
        %v2397 = vunpack.c.l.b16 %v2007
        %v2398 = vunpack.c.h.b16 %v2007
        %v2399 = vunpack.c.l.b16 %v2008
        %v2400 = vunpack.c.h.b16 %v2008
        %v2401 = vunpack.c.l.b16 %v2009
        %v2402 = vunpack.c.h.b16 %v2009
        %v2403 = vunpack.c.l.b16 %v2010
        %v2404 = vunpack.c.h.b16 %v2010
        %v2405 = vunpack.c.l.b16 %v2011
        %v2406 = vunpack.c.h.b16 %v2011
        %v2407 = vunpack.c.l.b16 %v2012
        %v2408 = vunpack.c.h.b16 %v2012
        %v2409 = vunpack.c.l.b16 %v2013
        %v2410 = vunpack.c.h.b16 %v2013
        %v2411 = vunpack.c.l.b16 %v2014
        %v2412 = vunpack.c.h.b16 %v2014
        %v2413 = vunpack.c.l.b16 %v2015
        %v2414 = vunpack.c.h.b16 %v2015
        %v2415 = vunpack.c.l.b16 %v2016
        %v2416 = vunpack.c.h.b16 %v2016
        %v2417 = vunpack.c.l.b16 %v2017
        %v2418 = vunpack.c.h.b16 %v2017
        %v2419 = vunpack.c.l.b16 %v2018
        %v2420 = vunpack.c.h.b16 %v2018
        %v2421 = vunpack.c.l.b16 %v2019
        %v2422 = vunpack.c.h.b16 %v2019
        %v2423 = vunpack.c.l.b16 %v2020
        %v2424 = vunpack.c.h.b16 %v2020
        %v2425 = vunpack.c.l.b16 %v2021
        %v2426 = vunpack.c.h.b16 %v2021
        %v2427 = vunpack.c.l.b16 %v2022
        %v2428 = vunpack.c.h.b16 %v2022
        %v2429 = vpack.c.b16 %v2177, %v2173
        %v2430 = vpack.c.b16 %v2178, %v2174
        %v2431 = vpack.c.b16 %v2179, %v2175
        %v2432 = vpack.c.b16 %v2180, %v2176
        %v2433 = vpack.c.b16 %v2185, %v2181
        %v2434 = vpack.c.b16 %v2186, %v2182
        %v2435 = vpack.c.b16 %v2187, %v2183
        %v2436 = vpack.c.b16 %v2188, %v2184
        %v2437 = vpack.c.b16 %v2193, %v2189
        %v2438 = vpack.c.b16 %v2194, %v2190
        %v2439 = vpack.c.b16 %v2195, %v2191
        %v2440 = vpack.c.b16 %v2196, %v2192
        %v2441 = vpack.c.b16 %v2201, %v2197
        %v2442 = vpack.c.b16 %v2202, %v2198
        %v2443 = vpack.c.b16 %v2203, %v2199
        %v2444 = vpack.c.b16 %v2204, %v2200
        %v2445 = vpack.c.b16 %v2209, %v2205
        %v2446 = vpack.c.b16 %v2210, %v2206
        %v2447 = vpack.c.b16 %v2211, %v2207
        %v2448 = vpack.c.b16 %v2212, %v2208
        %v2449 = vpack.c.b16 %v2217, %v2213
        %v2450 = vpack.c.b16 %v2218, %v2214
        %v2451 = vpack.c.b16 %v2219, %v2215
        %v2452 = vpack.c.b16 %v2220, %v2216
        %v2453 = vpack.c.b16 %v2225, %v2221
        %v2454 = vpack.c.b16 %v2226, %v2222
        %v2455 = vpack.c.b16 %v2227, %v2223
        %v2456 = vpack.c.b16 %v2228, %v2224
        %v2457 = vpack.c.b16 %v2233, %v2229
        %v2458 = vpack.c.b16 %v2234, %v2230
        %v2459 = vpack.c.b16 %v2235, %v2231
        %v2460 = vpack.c.b16 %v2236, %v2232
        %v2461 = vpack.c.b16 %v2241, %v2237
        %v2462 = vpack.c.b16 %v2242, %v2238
        %v2463 = vpack.c.b16 %v2243, %v2239
        %v2464 = vpack.c.b16 %v2244, %v2240
        %v2465 = vpack.c.b16 %v2249, %v2245
        %v2466 = vpack.c.b16 %v2250, %v2246
        %v2467 = vpack.c.b16 %v2251, %v2247
        %v2468 = vpack.c.b16 %v2252, %v2248
        %v2469 = vpack.c.b16 %v2257, %v2253
        %v2470 = vpack.c.b16 %v2258, %v2254
        %v2471 = vpack.c.b16 %v2259, %v2255
        %v2472 = vpack.c.b16 %v2260, %v2256
        %v2473 = vpack.c.b16 %v2265, %v2261
        %v2474 = vpack.c.b16 %v2266, %v2262
        %v2475 = vpack.c.b16 %v2267, %v2263
        %v2476 = vpack.c.b16 %v2268, %v2264
        %v2477 = vpack.c.b16 %v2273, %v2269
        %v2478 = vpack.c.b16 %v2274, %v2270
        %v2479 = vpack.c.b16 %v2275, %v2271
        %v2480 = vpack.c.b16 %v2276, %v2272
        %v2481 = vpack.c.b16 %v2281, %v2277
        %v2482 = vpack.c.b16 %v2282, %v2278
        %v2483 = vpack.c.b16 %v2283, %v2279
        %v2484 = vpack.c.b16 %v2284, %v2280
        %v2485 = vpack.c.b16 %v2289, %v2285
        %v2486 = vpack.c.b16 %v2290, %v2286
        %v2487 = vpack.c.b16 %v2291, %v2287
        %v2488 = vpack.c.b16 %v2292, %v2288
        %v2489 = vpack.c.b16 %v2297, %v2293
        %v2490 = vpack.c.b16 %v2298, %v2294
        %v2491 = vpack.c.b16 %v2299, %v2295
        %v2492 = vpack.c.b16 %v2300, %v2296
        %v2493 = vpack.c.b16 %v2305, %v2301
        %v2494 = vpack.c.b16 %v2306, %v2302
        %v2495 = vpack.c.b16 %v2307, %v2303
        %v2496 = vpack.c.b16 %v2308, %v2304
        %v2497 = vpack.c.b16 %v2313, %v2309
        %v2498 = vpack.c.b16 %v2314, %v2310
        %v2499 = vpack.c.b16 %v2315, %v2311
        %v2500 = vpack.c.b16 %v2316, %v2312
        %v2501 = vpack.c.b16 %v2321, %v2317
        %v2502 = vpack.c.b16 %v2322, %v2318
        %v2503 = vpack.c.b16 %v2323, %v2319
        %v2504 = vpack.c.b16 %v2324, %v2320
        %v2505 = vpack.c.b16 %v2329, %v2325
        %v2506 = vpack.c.b16 %v2330, %v2326
        %v2507 = vpack.c.b16 %v2331, %v2327
        %v2508 = vpack.c.b16 %v2332, %v2328
        %v2509 = vpack.c.b16 %v2337, %v2333
        %v2510 = vpack.c.b16 %v2338, %v2334
        %v2511 = vpack.c.b16 %v2339, %v2335
        %v2512 = vpack.c.b16 %v2340, %v2336
        %v2513 = vpack.c.b16 %v2345, %v2341
        %v2514 = vpack.c.b16 %v2346, %v2342
        %v2515 = vpack.c.b16 %v2347, %v2343
        %v2516 = vpack.c.b16 %v2348, %v2344
        %v2517 = vpack.c.b16 %v2353, %v2349
        %v2518 = vpack.c.b16 %v2354, %v2350
        %v2519 = vpack.c.b16 %v2355, %v2351
        %v2520 = vpack.c.b16 %v2356, %v2352
        %v2521 = vpack.c.b16 %v2361, %v2357
        %v2522 = vpack.c.b16 %v2362, %v2358
        %v2523 = vpack.c.b16 %v2363, %v2359
        %v2524 = vpack.c.b16 %v2364, %v2360
        %v2525 = vpack.c.b16 %v2369, %v2365
        %v2526 = vpack.c.b16 %v2370, %v2366
        %v2527 = vpack.c.b16 %v2371, %v2367
        %v2528 = vpack.c.b16 %v2372, %v2368
        %v2529 = vpack.c.b16 %v2377, %v2373
        %v2530 = vpack.c.b16 %v2378, %v2374
        %v2531 = vpack.c.b16 %v2379, %v2375
        %v2532 = vpack.c.b16 %v2380, %v2376
        %v2533 = vpack.c.b16 %v2385, %v2381
        %v2534 = vpack.c.b16 %v2386, %v2382
        %v2535 = vpack.c.b16 %v2387, %v2383
        %v2536 = vpack.c.b16 %v2388, %v2384
        %v2537 = vpack.c.b16 %v2393, %v2389
        %v2538 = vpack.c.b16 %v2394, %v2390
        %v2539 = vpack.c.b16 %v2395, %v2391
        %v2540 = vpack.c.b16 %v2396, %v2392
        %v2541 = vpack.c.b16 %v2401, %v2397
        %v2542 = vpack.c.b16 %v2402, %v2398
        %v2543 = vpack.c.b16 %v2403, %v2399
        %v2544 = vpack.c.b16 %v2404, %v2400
        %v2545 = vpack.c.b16 %v2409, %v2405
        %v2546 = vpack.c.b16 %v2410, %v2406
        %v2547 = vpack.c.b16 %v2411, %v2407
        %v2548 = vpack.c.b16 %v2412, %v2408
        %v2549 = vpack.c.b16 %v2417, %v2413
        %v2550 = vpack.c.b16 %v2418, %v2414
        %v2551 = vpack.c.b16 %v2419, %v2415
        %v2552 = vpack.c.b16 %v2420, %v2416
        %v2553 = vpack.c.b16 %v2425, %v2421
        %v2554 = vpack.c.b16 %v2426, %v2422
        %v2555 = vpack.c.b16 %v2427, %v2423
        %v2556 = vpack.c.b16 %v2428, %v2424
        %2685 = vmatprep.subr.bf16.mxu0 %v2458
        %2686 = vmatpush1.bf16.msra.mxu0 %v2457
        %2687 = vmatprep.subr.bf16.mxu0 %v2454
        %2688 = vmatpush1.bf16.msra.mxu0 %v2453
        %2689 = vmatprep.subr.bf16.mxu0 %v2450
        %2690 = vmatpush1.bf16.msra.mxu0 %v2449
        %2691 = vmatprep.subr.bf16.mxu0 %v2446
        %2692 = vmatpush1.bf16.msra.mxu0 %v2445
        %2693 = vmatprep.subr.bf16.mxu0 %v2442
        %2694 = vmatpush1.bf16.msra.mxu0 %v2441
        %2695 = vmatprep.subr.bf16.mxu0 %v2438
        %2696 = vmatpush1.bf16.msra.mxu0 %v2437
        %2697 = vmatprep.subr.bf16.mxu0 %v2434
        %2698 = vmatpush1.bf16.msra.mxu0 %v2433
        %2699 = vmatprep.subr.bf16.mxu0 %v2430
        %2700 = vmatpush1.bf16.msra.mxu0 %v2429
        %2701 = vmatprep.subr.bf16.mxu0 %v2490
        %2702 = vmatpush2.bf16.msra.mxu0 %v2489
        %2703 = vmatprep.subr.bf16.mxu0 %v2486
        %2704 = vmatpush2.bf16.msra.mxu0 %v2485
        %2705 = vmatprep.subr.bf16.mxu0 %v2482
        %2706 = vmatpush2.bf16.msra.mxu0 %v2481
        %2707 = vmatprep.subr.bf16.mxu0 %v2478
        %2708 = vmatpush2.bf16.msra.mxu0 %v2477
        %2709 = vmatprep.subr.bf16.mxu0 %v2474
        %2710 = vmatpush2.bf16.msra.mxu0 %v2473
        %2711 = vmatprep.subr.bf16.mxu0 %v2470
        %2712 = vmatpush2.bf16.msra.mxu0 %v2469
        %2713 = vmatprep.subr.bf16.mxu0 %v2466
        %2714 = vmatpush2.bf16.msra.mxu0 %v2465
        %2715 = vmatprep.subr.bf16.mxu0 %v2462
        %2716 = vmatpush2.bf16.msra.mxu0 %v2461
        %2717 = vmatprep.mubr.bf16.mxu0 %v1892
        %2718 = vmatmul.mubr.bf16.gmra.mxu0 %v1891
        %v2719 = vpop.f32.mrf.mxu0
        %v2720 = vadd.f32 %v2028, %v2719
        %v2721 = vpop.f32.mrf.mxu0
        %v2722 = vadd.f32 %v2032, %v2721
        %v2723 = vpop.f32.mrf.mxu0
        %v2724 = vadd.f32 %v2028, %v2723
        %v2725 = vpop.f32.mrf.mxu0
        %v2726 = vadd.f32 %v2032, %v2725
        %2727 = vdwg.mxu0
        %2728 = vmatprep.subr.bf16.mxu0 %v2522
        %2729 = vmatpush1.bf16.msra.mxu0 %v2521
        %2730 = vmatprep.subr.bf16.mxu0 %v2518
        %2731 = vmatpush1.bf16.msra.mxu0 %v2517
        %2732 = vmatprep.subr.bf16.mxu0 %v2514
        %2733 = vmatpush1.bf16.msra.mxu0 %v2513
        %2734 = vmatprep.subr.bf16.mxu0 %v2510
        %2735 = vmatpush1.bf16.msra.mxu0 %v2509
        %2736 = vmatprep.subr.bf16.mxu0 %v2506
        %2737 = vmatpush1.bf16.msra.mxu0 %v2505
        %2738 = vmatprep.subr.bf16.mxu0 %v2502
        %2739 = vmatpush1.bf16.msra.mxu0 %v2501
        %2740 = vmatprep.subr.bf16.mxu0 %v2498
        %2741 = vmatpush1.bf16.msra.mxu0 %v2497
        %2742 = vmatprep.subr.bf16.mxu0 %v2494
        %2743 = vmatpush1.bf16.msra.mxu0 %v2493
        %2744 = vmatprep.subr.bf16.mxu0 %v2554
        %2745 = vmatpush2.bf16.msra.mxu0 %v2553
        %2746 = vmatprep.subr.bf16.mxu0 %v2550
        %2747 = vmatpush2.bf16.msra.mxu0 %v2549
        %2748 = vmatprep.subr.bf16.mxu0 %v2546
        %2749 = vmatpush2.bf16.msra.mxu0 %v2545
        %2750 = vmatprep.subr.bf16.mxu0 %v2542
        %2751 = vmatpush2.bf16.msra.mxu0 %v2541
        %2752 = vmatprep.subr.bf16.mxu0 %v2538
        %2753 = vmatpush2.bf16.msra.mxu0 %v2537
        %2754 = vmatprep.subr.bf16.mxu0 %v2534
        %2755 = vmatpush2.bf16.msra.mxu0 %v2533
        %2756 = vmatprep.subr.bf16.mxu0 %v2530
        %2757 = vmatpush2.bf16.msra.mxu0 %v2529
        %2758 = vmatprep.subr.bf16.mxu0 %v2526
        %2759 = vmatpush2.bf16.msra.mxu0 %v2525
        %2760 = vmatprep.mubr.bf16.mxu0 %v1894
        %2761 = vmatmul.mubr.bf16.gmra.mxu0 %v1893
        %v2762 = vpop.f32.mrf.mxu0
        %v2763 = vadd.f32 %v2720, %v2762
        %v2764 = vpop.f32.mrf.mxu0
        %v2765 = vadd.f32 %v2722, %v2764
        %v2766 = vpop.f32.mrf.mxu0
        %v2767 = vadd.f32 %v2724, %v2766
        %v2768 = vpop.f32.mrf.mxu0
        %v2769 = vadd.f32 %v2726, %v2768
        %2770 = vdwg.mxu0
        %2771 = vmatprep.subr.bf16.mxu0 %v2460
        %2772 = vmatpush1.bf16.msra.mxu0 %v2459
        %2773 = vmatprep.subr.bf16.mxu0 %v2456
        %2774 = vmatpush1.bf16.msra.mxu0 %v2455
        %2775 = vmatprep.subr.bf16.mxu0 %v2452
        %2776 = vmatpush1.bf16.msra.mxu0 %v2451
        %2777 = vmatprep.subr.bf16.mxu0 %v2448
        %2778 = vmatpush1.bf16.msra.mxu0 %v2447
        %2779 = vmatprep.subr.bf16.mxu0 %v2444
        %2780 = vmatpush1.bf16.msra.mxu0 %v2443
        %2781 = vmatprep.subr.bf16.mxu0 %v2440
        %2782 = vmatpush1.bf16.msra.mxu0 %v2439
        %2783 = vmatprep.subr.bf16.mxu0 %v2436
        %2784 = vmatpush1.bf16.msra.mxu0 %v2435
        %2785 = vmatprep.subr.bf16.mxu0 %v2432
        %2786 = vmatpush1.bf16.msra.mxu0 %v2431
        %2787 = vmatprep.subr.bf16.mxu0 %v2492
        %2788 = vmatpush2.bf16.msra.mxu0 %v2491
        %2789 = vmatprep.subr.bf16.mxu0 %v2488
        %2790 = vmatpush2.bf16.msra.mxu0 %v2487
        %2791 = vmatprep.subr.bf16.mxu0 %v2484
        %2792 = vmatpush2.bf16.msra.mxu0 %v2483
        %2793 = vmatprep.subr.bf16.mxu0 %v2480
        %2794 = vmatpush2.bf16.msra.mxu0 %v2479
        %2795 = vmatprep.subr.bf16.mxu0 %v2476
        %2796 = vmatpush2.bf16.msra.mxu0 %v2475
        %2797 = vmatprep.subr.bf16.mxu0 %v2472
        %2798 = vmatpush2.bf16.msra.mxu0 %v2471
        %2799 = vmatprep.subr.bf16.mxu0 %v2468
        %2800 = vmatpush2.bf16.msra.mxu0 %v2467
        %2801 = vmatprep.subr.bf16.mxu0 %v2464
        %2802 = vmatpush2.bf16.msra.mxu0 %v2463
        %2803 = vmatprep.mubr.bf16.mxu0 %v1892
        %2804 = vmatmul.mubr.bf16.gmra.mxu0 %v1891
        %v2805 = vpop.f32.mrf.mxu0
        %v2806 = vadd.f32 %v2036, %v2805
        %v2807 = vpop.f32.mrf.mxu0
        %v2808 = vadd.f32 %v2040, %v2807
        %v2809 = vpop.f32.mrf.mxu0
        %v2810 = vadd.f32 %v2036, %v2809
        %v2811 = vpop.f32.mrf.mxu0
        %v2812 = vadd.f32 %v2040, %v2811
        %2813 = vdwg.mxu0
        %2814 = vmatprep.subr.bf16.mxu0 %v2524
        %2815 = vmatpush1.bf16.msra.mxu0 %v2523
        %2816 = vmatprep.subr.bf16.mxu0 %v2520
        %2817 = vmatpush1.bf16.msra.mxu0 %v2519
        %2818 = vmatprep.subr.bf16.mxu0 %v2516
        %2819 = vmatpush1.bf16.msra.mxu0 %v2515
        %2820 = vmatprep.subr.bf16.mxu0 %v2512
        %2821 = vmatpush1.bf16.msra.mxu0 %v2511
        %2822 = vmatprep.subr.bf16.mxu0 %v2508
        %2823 = vmatpush1.bf16.msra.mxu0 %v2507
        %2824 = vmatprep.subr.bf16.mxu0 %v2504
        %2825 = vmatpush1.bf16.msra.mxu0 %v2503
        %2826 = vmatprep.subr.bf16.mxu0 %v2500
        %2827 = vmatpush1.bf16.msra.mxu0 %v2499
        %2828 = vmatprep.subr.bf16.mxu0 %v2496
        %2829 = vmatpush1.bf16.msra.mxu0 %v2495
        %2830 = vmatprep.subr.bf16.mxu0 %v2556
        %2831 = vmatpush2.bf16.msra.mxu0 %v2555
        %2832 = vmatprep.subr.bf16.mxu0 %v2552
        %2833 = vmatpush2.bf16.msra.mxu0 %v2551
        %2834 = vmatprep.subr.bf16.mxu0 %v2548
        %2835 = vmatpush2.bf16.msra.mxu0 %v2547
        %2836 = vmatprep.subr.bf16.mxu0 %v2544
        %2837 = vmatpush2.bf16.msra.mxu0 %v2543
        %2838 = vmatprep.subr.bf16.mxu0 %v2540
        %2839 = vmatpush2.bf16.msra.mxu0 %v2539
        %2840 = vmatprep.subr.bf16.mxu0 %v2536
        %2841 = vmatpush2.bf16.msra.mxu0 %v2535
        %2842 = vmatprep.subr.bf16.mxu0 %v2532
        %2843 = vmatpush2.bf16.msra.mxu0 %v2531
        %2844 = vmatprep.subr.bf16.mxu0 %v2528
        %2845 = vmatpush2.bf16.msra.mxu0 %v2527
        %2846 = vmatprep.mubr.bf16.mxu0 %v1894
        %2847 = vmatmul.mubr.bf16.gmra.mxu0 %v1893
        %v2848 = vpop.f32.mrf.mxu0
        %v2849 = vadd.f32 %v2806, %v2848
        %v2850 = vpop.f32.mrf.mxu0
        %v2851 = vadd.f32 %v2808, %v2850
        %v2852 = vpop.f32.mrf.mxu0
        %v2853 = vadd.f32 %v2810, %v2852
        %v2854 = vpop.f32.mrf.mxu0
        %v2855 = vadd.f32 %v2812, %v2854
        %2856 = vdwg.mxu0
        %v2857 = vmax.f32 %v2763, 0.0
        %v2858 = vmax.f32 %v2765, 0.0
        %v2859 = vmax.f32 %v2849, 0.0
        %v2860 = vmax.f32 %v2851, 0.0
        %v2861 = vmax.f32 %v2767, 0.0
        %v2862 = vmax.f32 %v2769, 0.0
        %v2863 = vmax.f32 %v2853, 0.0
        %v2864 = vmax.f32 %v2855, 0.0
        %v2865 = vpack.c.bf16 %v2861, %v2857
        %v2866 = vpack.c.bf16 %v2862, %v2858
        %v2867 = vpack.c.bf16 %v2863, %v2859
        %v2868 = vpack.c.bf16 %v2864, %v2860
        %v2869 = vld [vmem:[%s5] sm:$0xf]
        %v2870 = vld [vmem:[%s5 + $0x4] sm:$0xf]
        %v2871 = vld [vmem:[%s5 + $0x8] sm:$0xf]
        %v2872 = vld [vmem:[%s5 + $0xc] sm:$0xf]
        %v2873 = vld [vmem:[%s5 + $0x10] sm:$0xf]
        %v2874 = vld [vmem:[%s5 + $0x14] sm:$0xf]
        %v2875 = vld [vmem:[%s5 + $0x18] sm:$0xf]
        %v2876 = vld [vmem:[%s5 + $0x1c] sm:$0xf]
        %v2877 = vld [vmem:[%s5 + $0x20] sm:$0xf]
        %v2878 = vld [vmem:[%s5 + $0x24] sm:$0xf]
        %v2879 = vld [vmem:[%s5 + $0x28] sm:$0xf]
        %v2880 = vld [vmem:[%s5 + $0x2c] sm:$0xf]
        %v2881 = vld [vmem:[%s5 + $0x30] sm:$0xf]
        %v2882 = vld [vmem:[%s5 + $0x34] sm:$0xf]
        %v2883 = vld [vmem:[%s5 + $0x38] sm:$0xf]
        %v2884 = vld [vmem:[%s5 + $0x3c] sm:$0xf]
        %v2885 = vld [vmem:[%s5 + $0x40] sm:$0xf]
        %v2886 = vld [vmem:[%s5 + $0x44] sm:$0xf]
        %v2887 = vld [vmem:[%s5 + $0x48] sm:$0xf]
        %v2888 = vld [vmem:[%s5 + $0x4c] sm:$0xf]
        %v2889 = vld [vmem:[%s5 + $0x50] sm:$0xf]
        %v2890 = vld [vmem:[%s5 + $0x54] sm:$0xf]
        %v2891 = vld [vmem:[%s5 + $0x58] sm:$0xf]
        %v2892 = vld [vmem:[%s5 + $0x5c] sm:$0xf]
        %v2893 = vld [vmem:[%s5 + $0x60] sm:$0xf]
        %v2894 = vld [vmem:[%s5 + $0x64] sm:$0xf]
        %v2895 = vld [vmem:[%s5 + $0x68] sm:$0xf]
        %v2896 = vld [vmem:[%s5 + $0x6c] sm:$0xf]
        %v2897 = vld [vmem:[%s5 + $0x70] sm:$0xf]
        %v2898 = vld [vmem:[%s5 + $0x74] sm:$0xf]
        %v2899 = vld [vmem:[%s5 + $0x78] sm:$0xf]
        %v2900 = vld [vmem:[%s5 + $0x7c] sm:$0xf]
        %v2901 = vld [vmem:[%s5 + $0x80] sm:$0xf]
        %v2902 = vld [vmem:[%s5 + $0x84] sm:$0xf]
        %v2903 = vld [vmem:[%s5 + $0x88] sm:$0xf]
        %v2904 = vld [vmem:[%s5 + $0x8c] sm:$0xf]
        %v2905 = vld [vmem:[%s5 + $0x90] sm:$0xf]
        %v2906 = vld [vmem:[%s5 + $0x94] sm:$0xf]
        %v2907 = vld [vmem:[%s5 + $0x98] sm:$0xf]
        %v2908 = vld [vmem:[%s5 + $0x9c] sm:$0xf]
        %v2909 = vld [vmem:[%s5 + $0xa0] sm:$0xf]
        %v2910 = vld [vmem:[%s5 + $0xa4] sm:$0xf]
        %v2911 = vld [vmem:[%s5 + $0xa8] sm:$0xf]
        %v2912 = vld [vmem:[%s5 + $0xac] sm:$0xf]
        %v2913 = vld [vmem:[%s5 + $0xb0] sm:$0xf]
        %v2914 = vld [vmem:[%s5 + $0xb4] sm:$0xf]
        %v2915 = vld [vmem:[%s5 + $0xb8] sm:$0xf]
        %v2916 = vld [vmem:[%s5 + $0xbc] sm:$0xf]
        %v2917 = vld [vmem:[%s5 + $0xc0] sm:$0xf]
        %v2918 = vld [vmem:[%s5 + $0xc4] sm:$0xf]
        %v2919 = vld [vmem:[%s5 + $0xc8] sm:$0xf]
        %v2920 = vld [vmem:[%s5 + $0xcc] sm:$0xf]
        %v2921 = vld [vmem:[%s5 + $0xd0] sm:$0xf]
        %v2922 = vld [vmem:[%s5 + $0xd4] sm:$0xf]
        %v2923 = vld [vmem:[%s5 + $0xd8] sm:$0xf]
        %v2924 = vld [vmem:[%s5 + $0xdc] sm:$0xf]
        %v2925 = vld [vmem:[%s5 + $0xe0] sm:$0xf]
        %v2926 = vld [vmem:[%s5 + $0xe4] sm:$0xf]
        %v2927 = vld [vmem:[%s5 + $0xe8] sm:$0xf]
        %v2928 = vld [vmem:[%s5 + $0xec] sm:$0xf]
        %v2929 = vld [vmem:[%s5 + $0xf0] sm:$0xf]
        %v2930 = vld [vmem:[%s5 + $0xf4] sm:$0xf]
        %v2931 = vld [vmem:[%s5 + $0xf8] sm:$0xf]
        %v2932 = vld [vmem:[%s5 + $0xfc] sm:$0xf]
        %v2933 = vld [vmem:[%s6] sm:$0x1]
        %v2935 = vlaneseq
        %v2936 = vshrl.u32 %v2935, 7
        %v2937 = vsub.s32 0, %v2936
        %v2938 = vrot.slane %v2933, %v2937
        %v3004 = vunpack.c.l.b16 %v2869
        %v3005 = vunpack.c.l.b16 %v2870
        %v3006 = vunpack.c.l.b16 %v2871
        %v3007 = vunpack.c.l.b16 %v2872
        %v3008 = vunpack.c.l.b16 %v2873
        %v3009 = vunpack.c.l.b16 %v2874
        %v3010 = vunpack.c.l.b16 %v2875
        %v3011 = vunpack.c.l.b16 %v2876
        %v3012 = vunpack.c.l.b16 %v2877
        %v3013 = vunpack.c.l.b16 %v2878
        %v3014 = vunpack.c.l.b16 %v2879
        %v3015 = vunpack.c.l.b16 %v2880
        %v3016 = vunpack.c.l.b16 %v2881
        %v3017 = vunpack.c.l.b16 %v2882
        %v3018 = vunpack.c.l.b16 %v2883
        %v3019 = vunpack.c.l.b16 %v2884
        %v3020 = vunpack.c.l.b16 %v2885
        %v3021 = vunpack.c.l.b16 %v2886
        %v3022 = vunpack.c.l.b16 %v2887
        %v3023 = vunpack.c.l.b16 %v2888
        %v3024 = vunpack.c.l.b16 %v2889
        %v3025 = vunpack.c.l.b16 %v2890
        %v3026 = vunpack.c.l.b16 %v2891
        %v3027 = vunpack.c.l.b16 %v2892
        %v3028 = vunpack.c.l.b16 %v2893
        %v3029 = vunpack.c.l.b16 %v2894
        %v3030 = vunpack.c.l.b16 %v2895
        %v3031 = vunpack.c.l.b16 %v2896
        %v3032 = vunpack.c.l.b16 %v2897
        %v3033 = vunpack.c.l.b16 %v2898
        %v3034 = vunpack.c.l.b16 %v2899
        %v3035 = vunpack.c.l.b16 %v2900
        %v3036 = vunpack.c.l.b16 %v2901
        %v3037 = vunpack.c.l.b16 %v2902
        %v3038 = vunpack.c.l.b16 %v2903
        %v3039 = vunpack.c.l.b16 %v2904
        %v3040 = vunpack.c.l.b16 %v2905
        %v3041 = vunpack.c.l.b16 %v2906
        %v3042 = vunpack.c.l.b16 %v2907
        %v3043 = vunpack.c.l.b16 %v2908
        %v3044 = vunpack.c.l.b16 %v2909
        %v3045 = vunpack.c.l.b16 %v2910
        %v3046 = vunpack.c.l.b16 %v2911
        %v3047 = vunpack.c.l.b16 %v2912
        %v3048 = vunpack.c.l.b16 %v2913
        %v3049 = vunpack.c.l.b16 %v2914
        %v3050 = vunpack.c.l.b16 %v2915
        %v3051 = vunpack.c.l.b16 %v2916
        %v3052 = vunpack.c.l.b16 %v2917
        %v3053 = vunpack.c.l.b16 %v2918
        %v3054 = vunpack.c.l.b16 %v2919
        %v3055 = vunpack.c.l.b16 %v2920
        %v3056 = vunpack.c.l.b16 %v2921
        %v3057 = vunpack.c.l.b16 %v2922
        %v3058 = vunpack.c.l.b16 %v2923
        %v3059 = vunpack.c.l.b16 %v2924
        %v3060 = vunpack.c.l.b16 %v2925
        %v3061 = vunpack.c.l.b16 %v2926
        %v3062 = vunpack.c.l.b16 %v2927
        %v3063 = vunpack.c.l.b16 %v2928
        %v3064 = vunpack.c.l.b16 %v2929
        %v3065 = vunpack.c.l.b16 %v2930
        %v3066 = vunpack.c.l.b16 %v2931
        %v3067 = vunpack.c.l.b16 %v2932
        %v3068 = vpack.c.b16 %v3005, %v3004
        %v3069 = vpack.c.b16 %v3007, %v3006
        %v3070 = vpack.c.b16 %v3009, %v3008
        %v3071 = vpack.c.b16 %v3011, %v3010
        %v3072 = vpack.c.b16 %v3013, %v3012
        %v3073 = vpack.c.b16 %v3015, %v3014
        %v3074 = vpack.c.b16 %v3017, %v3016
        %v3075 = vpack.c.b16 %v3019, %v3018
        %v3076 = vpack.c.b16 %v3021, %v3020
        %v3077 = vpack.c.b16 %v3023, %v3022
        %v3078 = vpack.c.b16 %v3025, %v3024
        %v3079 = vpack.c.b16 %v3027, %v3026
        %v3080 = vpack.c.b16 %v3029, %v3028
        %v3081 = vpack.c.b16 %v3031, %v3030
        %v3082 = vpack.c.b16 %v3033, %v3032
        %v3083 = vpack.c.b16 %v3035, %v3034
        %v3084 = vpack.c.b16 %v3037, %v3036
        %v3085 = vpack.c.b16 %v3039, %v3038
        %v3086 = vpack.c.b16 %v3041, %v3040
        %v3087 = vpack.c.b16 %v3043, %v3042
        %v3088 = vpack.c.b16 %v3045, %v3044
        %v3089 = vpack.c.b16 %v3047, %v3046
        %v3090 = vpack.c.b16 %v3049, %v3048
        %v3091 = vpack.c.b16 %v3051, %v3050
        %v3092 = vpack.c.b16 %v3053, %v3052
        %v3093 = vpack.c.b16 %v3055, %v3054
        %v3094 = vpack.c.b16 %v3057, %v3056
        %v3095 = vpack.c.b16 %v3059, %v3058
        %v3096 = vpack.c.b16 %v3061, %v3060
        %v3097 = vpack.c.b16 %v3063, %v3062
        %v3098 = vpack.c.b16 %v3065, %v3064
        %v3099 = vpack.c.b16 %v3067, %v3066
        %3132 = vmatprep.subr.bf16.mxu0 0
        %3133 = vmatpush1.bf16.msra.mxu0 %v3075
        %3134 = vmatprep.subr.bf16.mxu0 0
        %3135 = vmatpush1.bf16.msra.mxu0 %v3074
        %3136 = vmatprep.subr.bf16.mxu0 0
        %3137 = vmatpush1.bf16.msra.mxu0 %v3073
        %3138 = vmatprep.subr.bf16.mxu0 0
        %3139 = vmatpush1.bf16.msra.mxu0 %v3072
        %3140 = vmatprep.subr.bf16.mxu0 0
        %3141 = vmatpush1.bf16.msra.mxu0 %v3071
        %3142 = vmatprep.subr.bf16.mxu0 0
        %3143 = vmatpush1.bf16.msra.mxu0 %v3070
        %3144 = vmatprep.subr.bf16.mxu0 0
        %3145 = vmatpush1.bf16.msra.mxu0 %v3069
        %3146 = vmatprep.subr.bf16.mxu0 0
        %3147 = vmatpush1.bf16.msra.mxu0 %v3068
        %3148 = vmatprep.subr.bf16.mxu0 0
        %3149 = vmatpush2.bf16.msra.mxu0 %v3083
        %3150 = vmatprep.subr.bf16.mxu0 0
        %3151 = vmatpush2.bf16.msra.mxu0 %v3082
        %3152 = vmatprep.subr.bf16.mxu0 0
        %3153 = vmatpush2.bf16.msra.mxu0 %v3081
        %3154 = vmatprep.subr.bf16.mxu0 0
        %3155 = vmatpush2.bf16.msra.mxu0 %v3080
        %3156 = vmatprep.subr.bf16.mxu0 0
        %3157 = vmatpush2.bf16.msra.mxu0 %v3079
        %3158 = vmatprep.subr.bf16.mxu0 0
        %3159 = vmatpush2.bf16.msra.mxu0 %v3078
        %3160 = vmatprep.subr.bf16.mxu0 0
        %3161 = vmatpush2.bf16.msra.mxu0 %v3077
        %3162 = vmatprep.subr.bf16.mxu0 0
        %3163 = vmatpush2.bf16.msra.mxu0 %v3076
        %3164 = vmatprep.mubr.bf16.mxu0 %v2866
        %3165 = vmatmul.mubr.bf16.gmra.mxu0 %v2865
        %v3166 = vpop.f32.mrf.mxu0
        %v3167 = vadd.f32 %v2938, %v3166
        %v3168 = vpop.f32.mrf.mxu0
        %v3169 = vpop.f32.mrf.mxu0
        %v3170 = vadd.f32 %v2938, %v3169
        %v3171 = vpop.f32.mrf.mxu0
        %3172 = vdwg.mxu0
        %3173 = vmatprep.subr.bf16.mxu0 0
        %3174 = vmatpush1.bf16.msra.mxu0 %v3091
        %3175 = vmatprep.subr.bf16.mxu0 0
        %3176 = vmatpush1.bf16.msra.mxu0 %v3090
        %3177 = vmatprep.subr.bf16.mxu0 0
        %3178 = vmatpush1.bf16.msra.mxu0 %v3089
        %3179 = vmatprep.subr.bf16.mxu0 0
        %3180 = vmatpush1.bf16.msra.mxu0 %v3088
        %3181 = vmatprep.subr.bf16.mxu0 0
        %3182 = vmatpush1.bf16.msra.mxu0 %v3087
        %3183 = vmatprep.subr.bf16.mxu0 0
        %3184 = vmatpush1.bf16.msra.mxu0 %v3086
        %3185 = vmatprep.subr.bf16.mxu0 0
        %3186 = vmatpush1.bf16.msra.mxu0 %v3085
        %3187 = vmatprep.subr.bf16.mxu0 0
        %3188 = vmatpush1.bf16.msra.mxu0 %v3084
        %3189 = vmatprep.subr.bf16.mxu0 0
        %3190 = vmatpush2.bf16.msra.mxu0 %v3099
        %3191 = vmatprep.subr.bf16.mxu0 0
        %3192 = vmatpush2.bf16.msra.mxu0 %v3098
        %3193 = vmatprep.subr.bf16.mxu0 0
        %3194 = vmatpush2.bf16.msra.mxu0 %v3097
        %3195 = vmatprep.subr.bf16.mxu0 0
        %3196 = vmatpush2.bf16.msra.mxu0 %v3096
        %3197 = vmatprep.subr.bf16.mxu0 0
        %3198 = vmatpush2.bf16.msra.mxu0 %v3095
        %3199 = vmatprep.subr.bf16.mxu0 0
        %3200 = vmatpush2.bf16.msra.mxu0 %v3094
        %3201 = vmatprep.subr.bf16.mxu0 0
        %3202 = vmatpush2.bf16.msra.mxu0 %v3093
        %3203 = vmatprep.subr.bf16.mxu0 0
        %3204 = vmatpush2.bf16.msra.mxu0 %v3092
        %3205 = vmatprep.mubr.bf16.mxu0 %v2868
        %3206 = vmatmul.mubr.bf16.gmra.mxu0 %v2867
        %v3207 = vpop.f32.mrf.mxu0
        %v3208 = vadd.f32 %v3167, %v3207
        %v3209 = vpop.f32.mrf.mxu0
        %v3210 = vpop.f32.mrf.mxu0
        %v3211 = vadd.f32 %v3170, %v3210
        %v3212 = vpop.f32.mrf.mxu0
        %3213 = vdwg.mxu0
        %3214 = vst [vmem:[%s313] sm:$0xff] %v3208
        %3215 = vst [vmem:[%s313 + $0x8] sm:$0xff] %v3211
        %s3216 = smul.u32 2, %s20
        %p3217 = scmp.lt.s32.totalorder %s3216, 3
        %s3218 = scalar_select %p3217, %s3216, 3
        %s3219 = smul.addr %s3218, 8
        %s3220 = scalar_lea.vmem %s7, %s3219
        // Predicated region
        $region57: #{neural_net_forward.1} parent=47 // pred_check
          %p3221 = pneg %p190
        $region58: #{neural_net_forward.1} parent=47 // pred_check_branch
          %3223 = sbr.rel (%p3221) target = $region60
        $region59: #{neural_net_forward.1} parent=47 // pred_region
          %s3224 = smul.u32 2, %s20
        $region60: #{neural_net_forward.1} parent=47 // pred_fallthru
          _
      $region48: #{neural_net_forward.1} parent=5 // pred_fallthru
        _
      %p3225 = scmp.le.s32.totalorder 2, %s15
      // Predicated region
      $region61: #{neural_net_forward.1} parent=5 // pred_check
        %p3226 = pneg %p3225
      $region62: #{neural_net_forward.1} parent=5 // pred_check_branch
        %3228 = sbr.rel (%p3226) target = $region64
      $region63: #{neural_net_forward.1} parent=5 // pred_region
        %s3229 = ssub.s32 %s15, 2
        // Predicated region
        $region65: #{neural_net_forward.1} parent=63 // pred_check
          %p3230 = pneg %p196
        $region66: #{neural_net_forward.1} parent=63 // pred_check_branch
          %3232 = sbr.rel (%p3230) target = $region68
        $region67: #{neural_net_forward.1} parent=63 // pred_region
          %s3233 = smul.u32 2, %s21
          %p3234 = scmp.lt.s32.totalorder %s3233, 3
          %s3235 = scalar_select %p3234, %s3233, 3
          %s3236 = smul.addr %s3235, 8
          %s3237 = scalar_lea.vmem %s7, %s3236
        $region68: #{neural_net_forward.1} parent=63 // pred_fallthru
          _
      $region64: #{neural_net_forward.1} parent=5 // pred_fallthru
        _
    $region6: #{neural_net_forward.1} parent=1 // loop_footer
      %s19 = sadd.s32 1, %s15
    $region7: #{neural_net_forward.1} parent=1 // loop_footer_branch
      %14 = sbr.rel target = $region3
    $region8: #{neural_net_forward.1} parent=1 // loop_exit
      _
    %3238 = vsyncpa [#allocation3], 1
    %s3239 = scalar_lea.sflag [#allocation3], 1
    %3240 = vsyncpa %s3239, 1
    %3241 = vsyncpa [#allocation5], 1

</llo_original>
